<compile_context>
chip_gen: v7x
topology: tpu7x:2x2x1
jax: 0.10.0
libtpu: 0.0.40
codegen_flags: <defaults>
</compile_context>

<pallas_src>
import functools

import jax
import jax.numpy as jnp
from jax.experimental import pallas as pl
from jax.experimental.pallas import tpu as pltpu

N_INPUT, N_OUTPUT, N_HIDDEN, N_LAYERS = 2, 5, 70, 8
OUT_PAD = 8      # pad the 5-wide head to a full 8-sublane vreg (unmasked vst)
LANE = 128


def _round_up(a, m):
    return ((a + m - 1) // m) * m


def _cdiv(a, b):
    return -(-a // b)


def _has_bf16_eup():
    # bf16 tanh/activations pay off on v6e/v7x (bf16 EUP/VPU); v5e has neither,
    # so keep activations f32 there (bf16 matmul inputs still help on v5e MXU).
    try:
        kind = jax.devices()[0].device_kind.lower()
    except Exception:  # pragma: no cover - conservative fallback
        return True
    return not ("v5 lite" in kind or "v5e" in kind or "v5litepod" in kind)


def mlp_kernel(x_ref, w0_ref, b0_ref, wh_ref, bh_ref, we_ref, be_ref, o_ref,
               *, mm_dtype, act_dtype):
    """Batch-on-lanes MLP. x_ref: (N_INPUT, tile), o_ref: (OUT_PAD, tile).

    Weight refs wh_ref/we_ref arrive already cast to mm_dtype by the wrapper.
    Matmuls accumulate in f32 on the MXU; tanh runs on the EUP in act_dtype.
    """
    x = x_ref[...]                        # (2, tile)  f32, batch on lanes
    w0 = w0_ref[...]                      # (70, 2)    f32

    # First layer has K=2: two broadcast FMAs on the VPU beat an MXU pass.
    h = jnp.tanh(w0[:, 0:1] * x[0:1, :] + w0[:, 1:2] * x[1:2, :] + b0_ref[...])
    h = h.astype(mm_dtype)

    # 7 hidden layers on the MXU (static unroll keeps the schedule visible).
    # NOTE: jnp.tanh lowers to the EUP transcendental; tanh volume rivals the
    # MXU work here, so keeping it off the VALU is what keeps this MXU-bound.
    for l in range(N_LAYERS - 1):
        acc = jnp.dot(wh_ref[l], h, preferred_element_type=jnp.float32)
        acc = acc + bh_ref[l]             # (70, 1) bias broadcast over lanes
        h = jnp.tanh(acc.astype(act_dtype)).astype(mm_dtype)

    out = jnp.dot(we_ref[...], h, preferred_element_type=jnp.float32)
    o_ref[...] = (out + be_ref[...]).astype(o_ref.dtype)   # (8, tile), unmasked


def init_params(key):
    """Xavier-normal weights, zero biases (matches ANN_UvModel._init_weights).

    Weights are stored PyTorch-style as (out_features, in_features); hidden
    weights/biases are stacked so the kernel takes a handful of inputs.
    """

    def xavier(key, fan_out, fan_in):
        std = (2.0 / (fan_in + fan_out)) ** 0.5
        return std * jax.random.normal(key, (fan_out, fan_in), dtype=jnp.float32)

    keys = jax.random.split(key, N_LAYERS + 1)
    w0 = xavier(keys[0], N_HIDDEN, N_INPUT)                     # (70, 2)
    b0 = jnp.zeros((N_HIDDEN, 1), jnp.float32)
    wh = jnp.stack([xavier(keys[i], N_HIDDEN, N_HIDDEN)
                    for i in range(1, N_LAYERS)])               # (7, 70, 70)
    bh = jnp.zeros((N_LAYERS - 1, N_HIDDEN, 1), jnp.float32)
    we = xavier(keys[N_LAYERS], N_OUTPUT, N_HIDDEN)             # (5, 70)
    be = jnp.zeros((N_OUTPUT, 1), jnp.float32)
    return (w0, b0, wh, bh, we, be)


def _choose_tiling(B, tile_b):
    """Pick (tile, B_pad, n_tiles): lane tiles are multiples of 128, padding
    waste is bounded (instead of padding B up to a whole tile), and the grid
    is kept even when there is enough work (v7x megacore balance)."""
    cap_chunks = max(1, _round_up(tile_b, LANE) // LANE)
    k = max(1, _cdiv(B, LANE))             # 128-lane chunks of batch
    n_tiles = _cdiv(k, cap_chunks)
    if k >= 2 and n_tiles % 2 == 1:        # even grid, but never double a tiny batch
        n_tiles += 1
    tile = _cdiv(k, n_tiles) * LANE
    return tile, tile * n_tiles, n_tiles


def ann_uv_forward(x, params, *, tile_b=8192, use_bf16=False, bf16_act=None):
    """x: (B, N_INPUT) float32 -> (B, N_OUTPUT) float32.

    use_bf16: cast matmul inputs (weights + activations fed to the MXU) to
      bf16 with f32 accumulation — recommended on all generations.
    bf16_act: run tanh / carry activations in bf16 (v6e/v7x). Defaults to
      auto (on, except v5e which lacks bf16 VPU/EUP). Ignored unless use_bf16.
    """
    w0, b0, wh, bh, we, be = params
    B = x.shape[0]

    if bf16_act is None:
        bf16_act = use_bf16 and _has_bf16_eup()
    mm_dtype = jnp.bfloat16 if use_bf16 else jnp.float32
    act_dtype = jnp.bfloat16 if (use_bf16 and bf16_act) else jnp.float32

    tile, B_pad, n_tiles = _choose_tiling(B, tile_b)

    # Transpose so batch sits on the lane (last) dimension.
    xt = jnp.pad(x, ((0, B_pad - B), (0, 0))).T                 # (N_INPUT, B_pad)

    # Pad the 5-wide head to 8 sublanes and pre-cast matmul weights ONCE here
    # instead of re-casting every grid step inside the kernel.
    we_p = jnp.pad(we, ((0, OUT_PAD - N_OUTPUT), (0, 0))).astype(mm_dtype)
    be_p = jnp.pad(be, ((0, OUT_PAD - N_OUTPUT), (0, 0)))       # (8, 1) f32
    wh_c = wh.astype(mm_dtype)

    def full_spec(arr):
        nd = arr.ndim
        return pl.BlockSpec(arr.shape, lambda i, _nd=nd: (0,) * _nd)

    in_specs = [pl.BlockSpec((N_INPUT, tile), lambda i: (0, i)),
                full_spec(w0), full_spec(b0),
                full_spec(wh_c), full_spec(bh),
                full_spec(we_p), full_spec(be_p)]
    out_specs = pl.BlockSpec((OUT_PAD, tile), lambda i: (0, i))

    cp_kwargs = dict(dimension_semantics=("parallel",))
    if tile >= 4096:
        # ~8 MiB of live activations at tile=8192; 32 MiB leaves headroom on
        # every generation (v7x physical VMEM is only 64 MiB per TensorCore).
        cp_kwargs["vmem_limit_bytes"] = 32 * 1024 * 1024

    out_t = pl.pallas_call(
        functools.partial(mlp_kernel, mm_dtype=mm_dtype, act_dtype=act_dtype),
        out_shape=jax.ShapeDtypeStruct((OUT_PAD, B_pad), jnp.float32),
        grid_spec=pltpu.PrefetchScalarGridSpec(
            num_scalar_prefetch=0,
            grid=(n_tiles,),
            in_specs=in_specs,
            out_specs=out_specs,
        ),
        compiler_params=pltpu.CompilerParams(**cp_kwargs),
    )(xt, w0, b0, wh_c, bh, we_p, be_p)

    # TODO(synk): if this sits in a tight training loop, fuse the pad/transpose
    # relayouts into the kernel to save two small HBM round trips per call.
    return out_t.T[:B, :N_OUTPUT]


def reference_forward(x, params):
    """Pure-JAX reference (PyTorch semantics: h @ W.T + b)."""
    w0, b0, wh, bh, we, be = params
    hp = jax.lax.Precision.HIGHEST
    h = jnp.tanh(jnp.dot(x, w0.T, precision=hp) + b0[:, 0])
    for l in range(wh.shape[0]):
        h = jnp.tanh(jnp.dot(h, wh[l].T, precision=hp) + bh[l, :, 0])
    return jnp.dot(h, we.T, precision=hp) + be[:, 0]


if __name__ == "__main__":
    key = jax.random.PRNGKey(0)
    pkey, xkey = jax.random.split(key)
    params = init_params(pkey)

    # Small batch of 2-D collocation points, consistent with N_INPUT=2.
    B = 100
    x = jax.random.uniform(xkey, (B, N_INPUT), dtype=jnp.float32)

    # Exact f32 MXU path (module semantics).
    y = jax.block_until_ready(ann_uv_forward(x, params))
    y_ref = reference_forward(x, params)
    assert y.shape == (B, N_OUTPUT)
    assert jnp.allclose(y, y_ref, atol=1e-4, rtol=1e-4)

    # Multi-tile path: B=300 -> 3x128-lane chunks -> even grid of 2 tiles.
    B2 = 300
    x2 = jax.random.uniform(jax.random.PRNGKey(1), (B2, N_INPUT),
                            dtype=jnp.float32)
    y2 = jax.block_until_ready(ann_uv_forward(x2, params))
    assert y2.shape == (B2, N_OUTPUT)
    assert jnp.allclose(y2, reference_forward(x2, params), atol=1e-4, rtol=1e-4)

    # bf16 matmul-input (+ bf16 activations on v6e/v7x) path: intentional
    # precision trade, f32 accumulation throughout -> looser tolerance.
    y_bf16 = jax.block_until_ready(ann_uv_forward(x, params, use_bf16=True))
    assert jnp.allclose(y_bf16, y_ref, atol=7.5e-2, rtol=7.5e-2)

    print("KERNEL_OK")
</pallas_src>

<mosaic_0001>
module attributes {stable_mosaic.version = 11 : i64} {
  func.func @mlp_kernel(%arg0: i32, %arg1: memref<2x128xf32, #tpu.memory_space<vmem>>, %arg2: memref<70x2xf32, #tpu.memory_space<vmem>>, %arg3: memref<70x1xf32, #tpu.memory_space<vmem>>, %arg4: memref<7x70x70xf32, #tpu.memory_space<vmem>>, %arg5: memref<7x70x1xf32, #tpu.memory_space<vmem>>, %arg6: memref<8x70xf32, #tpu.memory_space<vmem>>, %arg7: memref<8x1xf32, #tpu.memory_space<vmem>>, %arg8: memref<8x128xf32, #tpu.memory_space<vmem>>) attributes {dimension_semantics = [#tpu.dimension_semantics<parallel>], iteration_bounds = array<i64: 1>, scalar_prefetch = 0 : i64, scratch_operands = 0 : i64, tpu.core_type = #tpu.core_type<tc>, window_params = [{transform_indices = @transform_0, window_bounds = array<i64: 2, 128>}, {pipeline_mode = #tpu.pipeline_mode<synchronous>, transform_indices = @transform_1, window_bounds = array<i64: 70, 2>}, {pipeline_mode = #tpu.pipeline_mode<synchronous>, transform_indices = @transform_2, window_bounds = array<i64: 70, 1>}, {pipeline_mode = #tpu.pipeline_mode<synchronous>, transform_indices = @transform_3, window_bounds = array<i64: 7, 70, 70>}, {pipeline_mode = #tpu.pipeline_mode<synchronous>, transform_indices = @transform_4, window_bounds = array<i64: 7, 70, 1>}, {pipeline_mode = #tpu.pipeline_mode<synchronous>, transform_indices = @transform_5, window_bounds = array<i64: 8, 70>}, {pipeline_mode = #tpu.pipeline_mode<synchronous>, transform_indices = @transform_6, window_bounds = array<i64: 8, 1>}, {transform_indices = @transform_7, window_bounds = array<i64: 8, 128>}]} {
    %c0 = arith.constant 0 : index
    %c0_0 = arith.constant 0 : index
    %0 = vector.load %arg1[%c0, %c0_0] : memref<2x128xf32, #tpu.memory_space<vmem>>, vector<2x128xf32>
    %c0_1 = arith.constant 0 : index
    %c0_2 = arith.constant 0 : index
    %1 = vector.load %arg2[%c0_1, %c0_2] : memref<70x2xf32, #tpu.memory_space<vmem>>, vector<70x2xf32>
    %2 = vector.extract_strided_slice %1 {offsets = [0, 0], sizes = [70, 1], strides = [1, 1]} : vector<70x2xf32> to vector<70x1xf32>
    %3 = vector.extract_strided_slice %0 {offsets = [0, 0], sizes = [1, 128], strides = [1, 1]} : vector<2x128xf32> to vector<1x128xf32>
    %4 = vector.broadcast %2 : vector<70x1xf32> to vector<70x128xf32>
    %5 = vector.broadcast %3 : vector<1x128xf32> to vector<70x128xf32>
    %6 = arith.mulf %4, %5 : vector<70x128xf32>
    %7 = vector.extract_strided_slice %1 {offsets = [0, 1], sizes = [70, 1], strides = [1, 1]} : vector<70x2xf32> to vector<70x1xf32>
    %8 = vector.extract_strided_slice %0 {offsets = [1, 0], sizes = [1, 128], strides = [1, 1]} : vector<2x128xf32> to vector<1x128xf32>
    %9 = vector.broadcast %7 : vector<70x1xf32> to vector<70x128xf32>
    %10 = vector.broadcast %8 : vector<1x128xf32> to vector<70x128xf32>
    %11 = arith.mulf %9, %10 : vector<70x128xf32>
    %12 = arith.addf %6, %11 : vector<70x128xf32>
    %c0_3 = arith.constant 0 : index
    %c0_4 = arith.constant 0 : index
    %13 = vector.load %arg3[%c0_3, %c0_4] : memref<70x1xf32, #tpu.memory_space<vmem>>, vector<70x1xf32>
    %14 = vector.broadcast %13 : vector<70x1xf32> to vector<70x128xf32>
    %15 = arith.addf %12, %14 : vector<70x128xf32>
    %16 = math.tanh %15 : vector<70x128xf32>
    %c0_5 = arith.constant 0 : index
    %c0_6 = arith.constant 0 : index
    %c0_7 = arith.constant 0 : index
    %17 = vector.load %arg4[%c0_5, %c0_6, %c0_7] : memref<7x70x70xf32, #tpu.memory_space<vmem>>, vector<1x70x70xf32>
    %18 = vector.shape_cast %17 : vector<1x70x70xf32> to vector<70x70xf32>
    %cst = arith.constant dense<0.000000e+00> : vector<70x128xf32>
    %19 = tpu.matmul %18, %16, %cst {dimension_numbers = #tpu.dot_dimension_numbers<[1], [0], [0], [1], [0, 0, 1, 1], [], []>} : vector<70x70xf32>, vector<70x128xf32>, vector<70x128xf32> -> vector<70x128xf32>
    %c0_8 = arith.constant 0 : index
    %c0_9 = arith.constant 0 : index
    %c0_10 = arith.constant 0 : index
    %20 = vector.load %arg5[%c0_8, %c0_9, %c0_10] : memref<7x70x1xf32, #tpu.memory_space<vmem>>, vector<1x70x1xf32>
    %21 = vector.shape_cast %20 : vector<1x70x1xf32> to vector<70x1xf32>
    %22 = vector.broadcast %21 : vector<70x1xf32> to vector<70x128xf32>
    %23 = arith.addf %19, %22 : vector<70x128xf32>
    %24 = math.tanh %23 : vector<70x128xf32>
    %c1 = arith.constant 1 : index
    %c0_11 = arith.constant 0 : index
    %c0_12 = arith.constant 0 : index
    %25 = vector.load %arg4[%c1, %c0_11, %c0_12] : memref<7x70x70xf32, #tpu.memory_space<vmem>>, vector<1x70x70xf32>
    %26 = vector.shape_cast %25 : vector<1x70x70xf32> to vector<70x70xf32>
    %cst_13 = arith.constant dense<0.000000e+00> : vector<70x128xf32>
    %27 = tpu.matmul %26, %24, %cst_13 {dimension_numbers = #tpu.dot_dimension_numbers<[1], [0], [0], [1], [0, 0, 1, 1], [], []>} : vector<70x70xf32>, vector<70x128xf32>, vector<70x128xf32> -> vector<70x128xf32>
    %c1_14 = arith.constant 1 : index
    %c0_15 = arith.constant 0 : index
    %c0_16 = arith.constant 0 : index
    %28 = vector.load %arg5[%c1_14, %c0_15, %c0_16] : memref<7x70x1xf32, #tpu.memory_space<vmem>>, vector<1x70x1xf32>
    %29 = vector.shape_cast %28 : vector<1x70x1xf32> to vector<70x1xf32>
    %30 = vector.broadcast %29 : vector<70x1xf32> to vector<70x128xf32>
    %31 = arith.addf %27, %30 : vector<70x128xf32>
    %32 = math.tanh %31 : vector<70x128xf32>
    %c2 = arith.constant 2 : index
    %c0_17 = arith.constant 0 : index
    %c0_18 = arith.constant 0 : index
    %33 = vector.load %arg4[%c2, %c0_17, %c0_18] : memref<7x70x70xf32, #tpu.memory_space<vmem>>, vector<1x70x70xf32>
    %34 = vector.shape_cast %33 : vector<1x70x70xf32> to vector<70x70xf32>
    %cst_19 = arith.constant dense<0.000000e+00> : vector<70x128xf32>
    %35 = tpu.matmul %34, %32, %cst_19 {dimension_numbers = #tpu.dot_dimension_numbers<[1], [0], [0], [1], [0, 0, 1, 1], [], []>} : vector<70x70xf32>, vector<70x128xf32>, vector<70x128xf32> -> vector<70x128xf32>
    %c2_20 = arith.constant 2 : index
    %c0_21 = arith.constant 0 : index
    %c0_22 = arith.constant 0 : index
    %36 = vector.load %arg5[%c2_20, %c0_21, %c0_22] : memref<7x70x1xf32, #tpu.memory_space<vmem>>, vector<1x70x1xf32>
    %37 = vector.shape_cast %36 : vector<1x70x1xf32> to vector<70x1xf32>
    %38 = vector.broadcast %37 : vector<70x1xf32> to vector<70x128xf32>
    %39 = arith.addf %35, %38 : vector<70x128xf32>
    %40 = math.tanh %39 : vector<70x128xf32>
    %c3 = arith.constant 3 : index
    %c0_23 = arith.constant 0 : index
    %c0_24 = arith.constant 0 : index
    %41 = vector.load %arg4[%c3, %c0_23, %c0_24] : memref<7x70x70xf32, #tpu.memory_space<vmem>>, vector<1x70x70xf32>
    %42 = vector.shape_cast %41 : vector<1x70x70xf32> to vector<70x70xf32>
    %cst_25 = arith.constant dense<0.000000e+00> : vector<70x128xf32>
    %43 = tpu.matmul %42, %40, %cst_25 {dimension_numbers = #tpu.dot_dimension_numbers<[1], [0], [0], [1], [0, 0, 1, 1], [], []>} : vector<70x70xf32>, vector<70x128xf32>, vector<70x128xf32> -> vector<70x128xf32>
    %c3_26 = arith.constant 3 : index
    %c0_27 = arith.constant 0 : index
    %c0_28 = arith.constant 0 : index
    %44 = vector.load %arg5[%c3_26, %c0_27, %c0_28] : memref<7x70x1xf32, #tpu.memory_space<vmem>>, vector<1x70x1xf32>
    %45 = vector.shape_cast %44 : vector<1x70x1xf32> to vector<70x1xf32>
    %46 = vector.broadcast %45 : vector<70x1xf32> to vector<70x128xf32>
    %47 = arith.addf %43, %46 : vector<70x128xf32>
    %48 = math.tanh %47 : vector<70x128xf32>
    %c4 = arith.constant 4 : index
    %c0_29 = arith.constant 0 : index
    %c0_30 = arith.constant 0 : index
    %49 = vector.load %arg4[%c4, %c0_29, %c0_30] : memref<7x70x70xf32, #tpu.memory_space<vmem>>, vector<1x70x70xf32>
    %50 = vector.shape_cast %49 : vector<1x70x70xf32> to vector<70x70xf32>
    %cst_31 = arith.constant dense<0.000000e+00> : vector<70x128xf32>
    %51 = tpu.matmul %50, %48, %cst_31 {dimension_numbers = #tpu.dot_dimension_numbers<[1], [0], [0], [1], [0, 0, 1, 1], [], []>} : vector<70x70xf32>, vector<70x128xf32>, vector<70x128xf32> -> vector<70x128xf32>
    %c4_32 = arith.constant 4 : index
    %c0_33 = arith.constant 0 : index
    %c0_34 = arith.constant 0 : index
    %52 = vector.load %arg5[%c4_32, %c0_33, %c0_34] : memref<7x70x1xf32, #tpu.memory_space<vmem>>, vector<1x70x1xf32>
    %53 = vector.shape_cast %52 : vector<1x70x1xf32> to vector<70x1xf32>
    %54 = vector.broadcast %53 : vector<70x1xf32> to vector<70x128xf32>
    %55 = arith.addf %51, %54 : vector<70x128xf32>
    %56 = math.tanh %55 : vector<70x128xf32>
    %c5 = arith.constant 5 : index
    %c0_35 = arith.constant 0 : index
    %c0_36 = arith.constant 0 : index
    %57 = vector.load %arg4[%c5, %c0_35, %c0_36] : memref<7x70x70xf32, #tpu.memory_space<vmem>>, vector<1x70x70xf32>
    %58 = vector.shape_cast %57 : vector<1x70x70xf32> to vector<70x70xf32>
    %cst_37 = arith.constant dense<0.000000e+00> : vector<70x128xf32>
    %59 = tpu.matmul %58, %56, %cst_37 {dimension_numbers = #tpu.dot_dimension_numbers<[1], [0], [0], [1], [0, 0, 1, 1], [], []>} : vector<70x70xf32>, vector<70x128xf32>, vector<70x128xf32> -> vector<70x128xf32>
    %c5_38 = arith.constant 5 : index
    %c0_39 = arith.constant 0 : index
    %c0_40 = arith.constant 0 : index
    %60 = vector.load %arg5[%c5_38, %c0_39, %c0_40] : memref<7x70x1xf32, #tpu.memory_space<vmem>>, vector<1x70x1xf32>
    %61 = vector.shape_cast %60 : vector<1x70x1xf32> to vector<70x1xf32>
    %62 = vector.broadcast %61 : vector<70x1xf32> to vector<70x128xf32>
    %63 = arith.addf %59, %62 : vector<70x128xf32>
    %64 = math.tanh %63 : vector<70x128xf32>
    %c6 = arith.constant 6 : index
    %c0_41 = arith.constant 0 : index
    %c0_42 = arith.constant 0 : index
    %65 = vector.load %arg4[%c6, %c0_41, %c0_42] : memref<7x70x70xf32, #tpu.memory_space<vmem>>, vector<1x70x70xf32>
    %66 = vector.shape_cast %65 : vector<1x70x70xf32> to vector<70x70xf32>
    %cst_43 = arith.constant dense<0.000000e+00> : vector<70x128xf32>
    %67 = tpu.matmul %66, %64, %cst_43 {dimension_numbers = #tpu.dot_dimension_numbers<[1], [0], [0], [1], [0, 0, 1, 1], [], []>} : vector<70x70xf32>, vector<70x128xf32>, vector<70x128xf32> -> vector<70x128xf32>
    %c6_44 = arith.constant 6 : index
    %c0_45 = arith.constant 0 : index
    %c0_46 = arith.constant 0 : index
    %68 = vector.load %arg5[%c6_44, %c0_45, %c0_46] : memref<7x70x1xf32, #tpu.memory_space<vmem>>, vector<1x70x1xf32>
    %69 = vector.shape_cast %68 : vector<1x70x1xf32> to vector<70x1xf32>
    %70 = vector.broadcast %69 : vector<70x1xf32> to vector<70x128xf32>
    %71 = arith.addf %67, %70 : vector<70x128xf32>
    %72 = math.tanh %71 : vector<70x128xf32>
    %c0_47 = arith.constant 0 : index
    %c0_48 = arith.constant 0 : index
    %73 = vector.load %arg6[%c0_47, %c0_48] : memref<8x70xf32, #tpu.memory_space<vmem>>, vector<8x70xf32>
    %cst_49 = arith.constant dense<0.000000e+00> : vector<8x128xf32>
    %74 = tpu.matmul %73, %72, %cst_49 {dimension_numbers = #tpu.dot_dimension_numbers<[1], [0], [0], [1], [0, 0, 1, 1], [], []>} : vector<8x70xf32>, vector<70x128xf32>, vector<8x128xf32> -> vector<8x128xf32>
    %c0_50 = arith.constant 0 : index
    %c0_51 = arith.constant 0 : index
    %75 = vector.load %arg7[%c0_50, %c0_51] : memref<8x1xf32, #tpu.memory_space<vmem>>, vector<8x1xf32>
    %76 = vector.broadcast %75 : vector<8x1xf32> to vector<8x128xf32>
    %77 = arith.addf %74, %76 : vector<8x128xf32>
    %c0_52 = arith.constant 0 : index
    %c0_53 = arith.constant 0 : index
    %78 = vector.load %arg8[%c0_52, %c0_53] : memref<8x128xf32, #tpu.memory_space<vmem>>, vector<8x128xf32>
    tpu.vector_store %arg8[%c0_52, %c0_53], %77 {strides = array<i32>} : memref<8x128xf32, #tpu.memory_space<vmem>>, vector<8x128xf32>,
    return
  }
  func.func @transform_0(%arg0: i32) -> (i32, i32) {
    %c0_i32 = arith.constant 0 : i32
    %c0_i32_0 = arith.constant 0 : i32
    return %c0_i32, %arg0 : i32, i32
  }
  func.func @transform_1(%arg0: i32) -> (i32, i32) {
    %c0_i32 = arith.constant 0 : i32
    %c0_i32_0 = arith.constant 0 : i32
    %c0_i32_1 = arith.constant 0 : i32
    return %c0_i32, %c0_i32_0 : i32, i32
  }
  func.func @transform_2(%arg0: i32) -> (i32, i32) {
    %c0_i32 = arith.constant 0 : i32
    %c0_i32_0 = arith.constant 0 : i32
    %c0_i32_1 = arith.constant 0 : i32
    return %c0_i32, %c0_i32_0 : i32, i32
  }
  func.func @transform_3(%arg0: i32) -> (i32, i32, i32) {
    %c0_i32 = arith.constant 0 : i32
    %c0_i32_0 = arith.constant 0 : i32
    %c0_i32_1 = arith.constant 0 : i32
    %c0_i32_2 = arith.constant 0 : i32
    return %c0_i32, %c0_i32_0, %c0_i32_1 : i32, i32, i32
  }
  func.func @transform_4(%arg0: i32) -> (i32, i32, i32) {
    %c0_i32 = arith.constant 0 : i32
    %c0_i32_0 = arith.constant 0 : i32
    %c0_i32_1 = arith.constant 0 : i32
    %c0_i32_2 = arith.constant 0 : i32
    return %c0_i32, %c0_i32_0, %c0_i32_1 : i32, i32, i32
  }
  func.func @transform_5(%arg0: i32) -> (i32, i32) {
    %c0_i32 = arith.constant 0 : i32
    %c0_i32_0 = arith.constant 0 : i32
    %c0_i32_1 = arith.constant 0 : i32
    return %c0_i32, %c0_i32_0 : i32, i32
  }
  func.func @transform_6(%arg0: i32) -> (i32, i32) {
    %c0_i32 = arith.constant 0 : i32
    %c0_i32_0 = arith.constant 0 : i32
    %c0_i32_1 = arith.constant 0 : i32
    return %c0_i32, %c0_i32_0 : i32, i32
  }
  func.func @transform_7(%arg0: i32) -> (i32, i32) {
    %c0_i32 = arith.constant 0 : i32
    %c0_i32_0 = arith.constant 0 : i32
    return %c0_i32, %arg0 : i32, i32
  }
}

</mosaic_0001>

<llo_original>
// kernel: tpu_custom_call.1
$region0: #{tpu_custom_call.1}
  #allocation0 [shape = 'u32[]', space=smem, size = 0x4, offset = 0x4, fixed_abs, tag = 'smem constant byte address 0x4 - core index']
  #allocation1 [shape = 'u32[144,128]{1,0:T(1,128)}', space=vmem, size = 0x12000, scoped, tag = 'internal scratch']
  %s0 = inlined_call_operand.vmem [shape: f32[2,128], index: 0, kind: input, shape index: {}]
  %s1 = inlined_call_operand.vmem [shape: f32[70,2], index: 1, kind: input, shape index: {}]
  %s2 = inlined_call_operand.vmem [shape: f32[70,1], index: 2, kind: input, shape index: {}]
  %s3 = inlined_call_operand.vmem [shape: f32[7,70,70], index: 3, kind: input, shape index: {}]
  %s4 = inlined_call_operand.vmem [shape: f32[7,70,1], index: 4, kind: input, shape index: {}]
  %s5 = inlined_call_operand.vmem [shape: f32[8,70], index: 5, kind: input, shape index: {}]
  %s6 = inlined_call_operand.vmem [shape: f32[8,1], index: 6, kind: input, shape index: {}]
  %s7 = inlined_call_operand.hbm [shape: f32[8,128], index: 7, kind: output, shape index: {}]
  %s8 = sld [smem:[#allocation0]]
  $region38: #{tpu_custom_call.1} parent=0
    _
  %s10 = ssub.s32 1, %s8
  %s11 = scalar_select 0, %s10, %s8
  $region1: #{tpu_custom_call.1} parent=0
    #allocation2 [shape = 'u8[4096]{0}', space=vmem, size = 0x1000, scoped, tag = 'output window, operand 0, single buffered']
    #allocation3 [shape = 's32[1]{0}', space=sflag, size = 0x4, scoped, tag = 'scoped memory for tpu_custom_call.1']
    %12 = vsyncpa [#allocation3], 0
    // Predicated region
    $region2: #{tpu_custom_call.1} parent=1 // pred_check
      _
    $region3: #{tpu_custom_call.1} parent=1 // pred_check_branch
      %14 = sbr.rel (0) target = $region5
    $region4: #{tpu_custom_call.1} parent=1 // pred_region
      _
    $region5: #{tpu_custom_call.1} parent=1 // pred_fallthru
      _
    // Predicated region
    $region6: #{tpu_custom_call.1} parent=1 // pred_check
      _
    $region7: #{tpu_custom_call.1} parent=1 // pred_check_branch
      %16 = sbr.rel (0) target = $region9
    $region8: #{tpu_custom_call.1} parent=1 // pred_region
      _
    $region9: #{tpu_custom_call.1} parent=1 // pred_fallthru
      _
    // Predicated region
    $region10: #{tpu_custom_call.1} parent=1 // pred_check
      _
    $region11: #{tpu_custom_call.1} parent=1 // pred_check_branch
      %18 = sbr.rel (0) target = $region13
    $region12: #{tpu_custom_call.1} parent=1 // pred_region
      _
    $region13: #{tpu_custom_call.1} parent=1 // pred_fallthru
      _
    // Predicated region
    $region14: #{tpu_custom_call.1} parent=1 // pred_check
      _
    $region15: #{tpu_custom_call.1} parent=1 // pred_check_branch
      %20 = sbr.rel (0) target = $region17
    $region16: #{tpu_custom_call.1} parent=1 // pred_region
      _
    $region17: #{tpu_custom_call.1} parent=1 // pred_fallthru
      _
    // Predicated region
    $region18: #{tpu_custom_call.1} parent=1 // pred_check
      _
    $region19: #{tpu_custom_call.1} parent=1 // pred_check_branch
      %22 = sbr.rel (0) target = $region21
    $region20: #{tpu_custom_call.1} parent=1 // pred_region
      _
    $region21: #{tpu_custom_call.1} parent=1 // pred_fallthru
      _
    // Predicated region
    $region22: #{tpu_custom_call.1} parent=1 // pred_check
      _
    $region23: #{tpu_custom_call.1} parent=1 // pred_check_branch
      %24 = sbr.rel (0) target = $region25
    $region24: #{tpu_custom_call.1} parent=1 // pred_region
      _
    $region25: #{tpu_custom_call.1} parent=1 // pred_fallthru
      _
    // Predicated region
    $region26: #{tpu_custom_call.1} parent=1 // pred_check
      _
    $region27: #{tpu_custom_call.1} parent=1 // pred_check_branch
      %26 = sbr.rel (0) target = $region29
    $region28: #{tpu_custom_call.1} parent=1 // pred_region
      _
    $region29: #{tpu_custom_call.1} parent=1 // pred_fallthru
      _
    %v27 = vld [vmem:[%s0] sm:$0x3]
    %v28 = vld [vmem:[%s1] sm:$0xff]
    %v29 = vld [vmem:[%s1 + $0x8] sm:$0xff]
    %v30 = vld [vmem:[%s1 + $0x10] sm:$0xff]
    %v31 = vld [vmem:[%s1 + $0x18] sm:$0xff]
    %v32 = vld [vmem:[%s1 + $0x20] sm:$0xff]
    %v33 = vld [vmem:[%s1 + $0x28] sm:$0xff]
    %v34 = vld [vmem:[%s1 + $0x30] sm:$0xff]
    %v35 = vld [vmem:[%s1 + $0x38] sm:$0xff]
    %v36 = vld [vmem:[%s1 + $0x40] sm:$0x3f]
    %38 = vset.pattern.permute.xlu0 0
    %39 = vperm.xlu0 %38, %v28
    %v40 = vpop.permute.xlu0 %39
    %43 = vset.pattern.permute.xlu0 0
    %44 = vperm.xlu0 %43, %v29
    %v45 = vpop.permute.xlu0 %44
    %48 = vset.pattern.permute.xlu0 0
    %49 = vperm.xlu0 %48, %v30
    %v50 = vpop.permute.xlu0 %49
    %53 = vset.pattern.permute.xlu0 0
    %54 = vperm.xlu0 %53, %v31
    %v55 = vpop.permute.xlu0 %54
    %58 = vset.pattern.permute.xlu0 0
    %59 = vperm.xlu0 %58, %v32
    %v60 = vpop.permute.xlu0 %59
    %63 = vset.pattern.permute.xlu0 0
    %64 = vperm.xlu0 %63, %v33
    %v65 = vpop.permute.xlu0 %64
    %68 = vset.pattern.permute.xlu0 0
    %69 = vperm.xlu0 %68, %v34
    %v70 = vpop.permute.xlu0 %69
    %73 = vset.pattern.permute.xlu0 0
    %74 = vperm.xlu0 %73, %v35
    %v75 = vpop.permute.xlu0 %74
    %78 = vset.pattern.permute.xlu0 0
    %79 = vperm.xlu0 %78, %v36
    %v80 = vpop.permute.xlu0 %79
    %v82 = vlaneseq
    %v83 = vshrl.u32 %v82, 7
    %v84 = vsub.s32 0, %v83
    %v85 = vrot.slane %v27, %v84
    %v86 = vmul.f32 %v40, %v85
    %v87 = vmul.f32 %v45, %v85
    %v88 = vmul.f32 %v50, %v85
    %v89 = vmul.f32 %v55, %v85
    %v90 = vmul.f32 %v60, %v85
    %v91 = vmul.f32 %v65, %v85
    %v92 = vmul.f32 %v70, %v85
    %v93 = vmul.f32 %v75, %v85
    %v94 = vmul.f32 %v80, %v85
    %95 = vset.pattern.permute.xlu0 1
    %96 = vperm.xlu0 %95, %v28
    %v97 = vpop.permute.xlu0 %96
    %99 = vset.pattern.permute.xlu0 1
    %100 = vperm.xlu0 %99, %v29
    %v101 = vpop.permute.xlu0 %100
    %103 = vset.pattern.permute.xlu0 1
    %104 = vperm.xlu0 %103, %v30
    %v105 = vpop.permute.xlu0 %104
    %107 = vset.pattern.permute.xlu0 1
    %108 = vperm.xlu0 %107, %v31
    %v109 = vpop.permute.xlu0 %108
    %111 = vset.pattern.permute.xlu0 1
    %112 = vperm.xlu0 %111, %v32
    %v113 = vpop.permute.xlu0 %112
    %115 = vset.pattern.permute.xlu0 1
    %116 = vperm.xlu0 %115, %v33
    %v117 = vpop.permute.xlu0 %116
    %119 = vset.pattern.permute.xlu0 1
    %120 = vperm.xlu0 %119, %v34
    %v121 = vpop.permute.xlu0 %120
    %123 = vset.pattern.permute.xlu0 1
    %124 = vperm.xlu0 %123, %v35
    %v125 = vpop.permute.xlu0 %124
    %127 = vset.pattern.permute.xlu0 1
    %128 = vperm.xlu0 %127, %v36
    %v129 = vpop.permute.xlu0 %128
    %v131 = vlaneseq
    %v132 = vshrl.u32 %v131, 7
    %v133 = vsub.s32 1, %v132
    %v134 = vrot.slane %v27, %v133
    %v135 = vmul.f32 %v97, %v134
    %v136 = vmul.f32 %v101, %v134
    %v137 = vmul.f32 %v105, %v134
    %v138 = vmul.f32 %v109, %v134
    %v139 = vmul.f32 %v113, %v134
    %v140 = vmul.f32 %v117, %v134
    %v141 = vmul.f32 %v121, %v134
    %v142 = vmul.f32 %v125, %v134
    %v143 = vmul.f32 %v129, %v134
    %v144 = vadd.f32 %v86, %v135
    %v145 = vadd.f32 %v87, %v136
    %v146 = vadd.f32 %v88, %v137
    %v147 = vadd.f32 %v89, %v138
    %v148 = vadd.f32 %v90, %v139
    %v149 = vadd.f32 %v91, %v140
    %v150 = vadd.f32 %v92, %v141
    %v151 = vadd.f32 %v93, %v142
    %v152 = vadd.f32 %v94, %v143
    %v153 = vld [vmem:[%s2] sm:$0xff]
    %v154 = vld [vmem:[%s2 + $0x8] sm:$0xff]
    %v155 = vld [vmem:[%s2 + $0x10] sm:$0xff]
    %v156 = vld [vmem:[%s2 + $0x18] sm:$0xff]
    %v157 = vld [vmem:[%s2 + $0x20] sm:$0xff]
    %v158 = vld [vmem:[%s2 + $0x28] sm:$0xff]
    %v159 = vld [vmem:[%s2 + $0x30] sm:$0xff]
    %v160 = vld [vmem:[%s2 + $0x38] sm:$0xff]
    %v161 = vld [vmem:[%s2 + $0x40] sm:$0x3f]
    %163 = vset.pattern.permute.xlu0 0
    %164 = vperm.xlu0 %163, %v153
    %v165 = vpop.permute.xlu0 %164
    %168 = vset.pattern.permute.xlu0 0
    %169 = vperm.xlu0 %168, %v154
    %v170 = vpop.permute.xlu0 %169
    %173 = vset.pattern.permute.xlu0 0
    %174 = vperm.xlu0 %173, %v155
    %v175 = vpop.permute.xlu0 %174
    %178 = vset.pattern.permute.xlu0 0
    %179 = vperm.xlu0 %178, %v156
    %v180 = vpop.permute.xlu0 %179
    %183 = vset.pattern.permute.xlu0 0
    %184 = vperm.xlu0 %183, %v157
    %v185 = vpop.permute.xlu0 %184
    %188 = vset.pattern.permute.xlu0 0
    %189 = vperm.xlu0 %188, %v158
    %v190 = vpop.permute.xlu0 %189
    %193 = vset.pattern.permute.xlu0 0
    %194 = vperm.xlu0 %193, %v159
    %v195 = vpop.permute.xlu0 %194
    %198 = vset.pattern.permute.xlu0 0
    %199 = vperm.xlu0 %198, %v160
    %v200 = vpop.permute.xlu0 %199
    %203 = vset.pattern.permute.xlu0 0
    %204 = vperm.xlu0 %203, %v161
    %v205 = vpop.permute.xlu0 %204
    %v207 = vadd.f32 %v144, %v165
    %v208 = vadd.f32 %v145, %v170
    %v209 = vadd.f32 %v146, %v175
    %v210 = vadd.f32 %v147, %v180
    %v211 = vadd.f32 %v148, %v185
    %v212 = vadd.f32 %v149, %v190
    %v213 = vadd.f32 %v150, %v195
    %v214 = vadd.f32 %v151, %v200
    %v215 = vadd.f32 %v152, %v205
    %v216 = vtanh.pop %v207
    %v217 = vtanh.pop %v208
    %v218 = vtanh.pop %v209
    %v219 = vtanh.pop %v210
    %v220 = vtanh.pop %v211
    %v221 = vtanh.pop %v212
    %v222 = vtanh.pop %v213
    %v223 = vtanh.pop %v214
    %v224 = vtanh.pop %v215
    %v225 = vld [vmem:[%s3] sm:$0xff]
    %v226 = vld [vmem:[%s3 + $0x8] sm:$0xff]
    %v227 = vld [vmem:[%s3 + $0x10] sm:$0xff]
    %v228 = vld [vmem:[%s3 + $0x18] sm:$0xff]
    %v229 = vld [vmem:[%s3 + $0x20] sm:$0xff]
    %v230 = vld [vmem:[%s3 + $0x28] sm:$0xff]
    %v231 = vld [vmem:[%s3 + $0x30] sm:$0xff]
    %v232 = vld [vmem:[%s3 + $0x38] sm:$0xff]
    %v233 = vld [vmem:[%s3 + $0x40] sm:$0x3f]
    %v234 = vld [vmem:[%s4] sm:$0xff]
    %v235 = vld [vmem:[%s4 + $0x8] sm:$0xff]
    %v236 = vld [vmem:[%s4 + $0x10] sm:$0xff]
    %v237 = vld [vmem:[%s4 + $0x18] sm:$0xff]
    %v238 = vld [vmem:[%s4 + $0x20] sm:$0xff]
    %v239 = vld [vmem:[%s4 + $0x28] sm:$0xff]
    %v240 = vld [vmem:[%s4 + $0x30] sm:$0xff]
    %v241 = vld [vmem:[%s4 + $0x38] sm:$0xff]
    %v242 = vld [vmem:[%s4 + $0x40] sm:$0x3f]
    %244 = vset.pattern.permute.xlu0 0
    %245 = vperm.xlu0 %244, %v234
    %v246 = vpop.permute.xlu0 %245
    %249 = vset.pattern.permute.xlu0 0
    %250 = vperm.xlu0 %249, %v235
    %v251 = vpop.permute.xlu0 %250
    %254 = vset.pattern.permute.xlu0 0
    %255 = vperm.xlu0 %254, %v236
    %v256 = vpop.permute.xlu0 %255
    %259 = vset.pattern.permute.xlu0 0
    %260 = vperm.xlu0 %259, %v237
    %v261 = vpop.permute.xlu0 %260
    %264 = vset.pattern.permute.xlu0 0
    %265 = vperm.xlu0 %264, %v238
    %v266 = vpop.permute.xlu0 %265
    %269 = vset.pattern.permute.xlu0 0
    %270 = vperm.xlu0 %269, %v239
    %v271 = vpop.permute.xlu0 %270
    %274 = vset.pattern.permute.xlu0 0
    %275 = vperm.xlu0 %274, %v240
    %v276 = vpop.permute.xlu0 %275
    %279 = vset.pattern.permute.xlu0 0
    %280 = vperm.xlu0 %279, %v241
    %v281 = vpop.permute.xlu0 %280
    %284 = vset.pattern.permute.xlu0 0
    %285 = vperm.xlu0 %284, %v242
    %v286 = vpop.permute.xlu0 %285
    %vm288 = vcmask 572416
    %v290 = vsel %vm288, %v225, 0
    %v293 = vsel %vm288, %v226, 0
    %v296 = vsel %vm288, %v227, 0
    %v299 = vsel %vm288, %v228, 0
    %v302 = vsel %vm288, %v229, 0
    %v305 = vsel %vm288, %v230, 0
    %v308 = vsel %vm288, %v231, 0
    %v311 = vsel %vm288, %v232, 0
    %v314 = vsel %vm288, %v233, 0
    %vm316 = vcmask 1045504
    %v318 = vsel %vm316, %v224, 0
    %320 = vmatprep.subr.mxu0 0.0
    %321 = vmatpush1.msra.mxu0 %v216
    %322 = vmatprep.subr.mxu0 0.0
    %323 = vmatpush1.msra.mxu0 %v217
    %324 = vmatprep.subr.mxu0 0.0
    %325 = vmatpush1.msra.mxu0 %v218
    %326 = vmatprep.subr.mxu0 0.0
    %327 = vmatpush1.msra.mxu0 %v219
    %328 = vmatprep.subr.mxu0 0.0
    %329 = vmatpush1.msra.mxu0 %v220
    %330 = vmatprep.subr.mxu0 0.0
    %331 = vmatpush1.msra.mxu0 %v221
    %332 = vmatprep.subr.mxu0 0.0
    %333 = vmatpush1.msra.mxu0 %v222
    %334 = vmatprep.subr.mxu0 0.0
    %335 = vmatpush1.msra.mxu0 %v223
    %336 = vmatprep.subr.mxu0 0.0
    %337 = vmatpush1.msra.mxu0 %v318
    %338 = vmatprep.subr.mxu0 0.0
    %339 = vmatpush1.msra.mxu0 0.0
    %340 = vmatprep.subr.mxu0 0.0
    %341 = vmatpush1.msra.mxu0 0.0
    %342 = vmatprep.subr.mxu0 0.0
    %343 = vmatpush1.msra.mxu0 0.0
    %344 = vmatprep.subr.mxu0 0.0
    %345 = vmatpush1.msra.mxu0 0.0
    %346 = vmatprep.subr.mxu0 0.0
    %347 = vmatpush1.msra.mxu0 0.0
    %348 = vmatprep.subr.mxu0 0.0
    %349 = vmatpush1.msra.mxu0 0.0
    %350 = vmatprep.subr.mxu0 0.0
    %351 = vmatpush1.msra.mxu0 0.0
    %352 = vmatprep.subr.mxu0 0.0
    %353 = vmatpush1.msra.mxu0 0.0
    %354 = vmatprep.subr.mxu0 0.0
    %355 = vmatpush1.msra.mxu0 0.0
    %356 = vmatprep.subr.mxu0 0.0
    %357 = vmatpush1.msra.mxu0 0.0
    %358 = vmatprep.subr.mxu0 0.0
    %359 = vmatpush1.msra.mxu0 0.0
    %360 = vmatprep.subr.mxu0 0.0
    %361 = vmatpush1.msra.mxu0 0.0
    %362 = vmatprep.subr.mxu0 0.0
    %363 = vmatpush1.msra.mxu0 0.0
    %364 = vmatprep.subr.mxu0 0.0
    %365 = vmatpush1.msra.mxu0 0.0
    %366 = vmatprep.subr.mxu0 0.0
    %367 = vmatpush1.msra.mxu0 0.0
    %368 = vmatprep.subr.mxu0 0.0
    %369 = vmatpush1.msra.mxu0 0.0
    %370 = vmatprep.subr.mxu0 0.0
    %371 = vmatpush1.msra.mxu0 0.0
    %372 = vmatprep.subr.mxu0 0.0
    %373 = vmatpush1.msra.mxu0 0.0
    %374 = vmatprep.subr.mxu0 0.0
    %375 = vmatpush1.msra.mxu0 0.0
    %376 = vmatprep.subr.mxu0 0.0
    %377 = vmatpush1.msra.mxu0 0.0
    %378 = vmatprep.subr.mxu0 0.0
    %379 = vmatpush1.msra.mxu0 0.0
    %380 = vmatprep.subr.mxu0 0.0
    %381 = vmatpush1.msra.mxu0 0.0
    %382 = vmatprep.subr.mxu0 0.0
    %383 = vmatpush1.msra.mxu0 0.0
    %384 = vmatprep.mubr.f32.mxu0 0.0
    %385 = vmatmul.mubr.f32.gmra.mrb[0].mxu0 %v290
    %v386 = vpop.f32.mrb[0].mxu0
    %v387 = vadd.f32 %v246, %v386
    %v388 = vpop.f32.mrb[0].mxu0
    %389 = vmatprep.mubr.f32.mxu0 0.0
    %390 = vmatmul.mubr.f32.gmra.mrb[0].mxu0 %v293
    %v391 = vpop.f32.mrb[0].mxu0
    %v392 = vadd.f32 %v251, %v391
    %v393 = vpop.f32.mrb[0].mxu0
    %394 = vmatprep.mubr.f32.mxu0 0.0
    %395 = vmatmul.mubr.f32.gmra.mrb[0].mxu0 %v296
    %v396 = vpop.f32.mrb[0].mxu0
    %v397 = vadd.f32 %v256, %v396
    %v398 = vpop.f32.mrb[0].mxu0
    %399 = vmatprep.mubr.f32.mxu0 0.0
    %400 = vmatmul.mubr.f32.gmra.mrb[0].mxu0 %v299
    %v401 = vpop.f32.mrb[0].mxu0
    %v402 = vadd.f32 %v261, %v401
    %v403 = vpop.f32.mrb[0].mxu0
    %404 = vmatprep.mubr.f32.mxu0 0.0
    %405 = vmatmul.mubr.f32.gmra.mrb[0].mxu0 %v302
    %v406 = vpop.f32.mrb[0].mxu0
    %v407 = vadd.f32 %v266, %v406
    %v408 = vpop.f32.mrb[0].mxu0
    %409 = vmatprep.mubr.f32.mxu0 0.0
    %410 = vmatmul.mubr.f32.gmra.mrb[0].mxu0 %v305
    %v411 = vpop.f32.mrb[0].mxu0
    %v412 = vadd.f32 %v271, %v411
    %v413 = vpop.f32.mrb[0].mxu0
    %414 = vmatprep.mubr.f32.mxu0 0.0
    %415 = vmatmul.mubr.f32.gmra.mrb[0].mxu0 %v308
    %v416 = vpop.f32.mrb[0].mxu0
    %v417 = vadd.f32 %v276, %v416
    %v418 = vpop.f32.mrb[0].mxu0
    %419 = vmatprep.mubr.f32.mxu0 0.0
    %420 = vmatmul.mubr.f32.gmra.mrb[0].mxu0 %v311
    %v421 = vpop.f32.mrb[0].mxu0
    %v422 = vadd.f32 %v281, %v421
    %v423 = vpop.f32.mrb[0].mxu0
    %424 = vmatprep.mubr.f32.mxu0 0.0
    %425 = vmatmul.mubr.f32.gmra.mrb[0].mxu0 %v314
    %v426 = vpop.f32.mrb[0].mxu0
    %v427 = vadd.f32 %v286, %v426
    %v428 = vpop.f32.mrb[0].mxu0
    %429 = vdwg.mxu0
    %v430 = vtanh.pop %v387
    %v431 = vtanh.pop %v392
    %v432 = vtanh.pop %v397
    %v433 = vtanh.pop %v402
    %v434 = vtanh.pop %v407
    %v435 = vtanh.pop %v412
    %v436 = vtanh.pop %v417
    %v437 = vtanh.pop %v422
    %v438 = vtanh.pop %v427
    %s439 = scalar_lea.vmem %s3, 72
    %v440 = vld [vmem:[%s439] sm:$0xff]
    %v441 = vld [vmem:[%s439 + $0x8] sm:$0xff]
    %v442 = vld [vmem:[%s439 + $0x10] sm:$0xff]
    %v443 = vld [vmem:[%s439 + $0x18] sm:$0xff]
    %v444 = vld [vmem:[%s439 + $0x20] sm:$0xff]
    %v445 = vld [vmem:[%s439 + $0x28] sm:$0xff]
    %v446 = vld [vmem:[%s439 + $0x30] sm:$0xff]
    %v447 = vld [vmem:[%s439 + $0x38] sm:$0xff]
    %v448 = vld [vmem:[%s439 + $0x40] sm:$0x3f]
    %s449 = scalar_lea.vmem %s4, 72
    %v450 = vld [vmem:[%s449] sm:$0xff]
    %v451 = vld [vmem:[%s449 + $0x8] sm:$0xff]
    %v452 = vld [vmem:[%s449 + $0x10] sm:$0xff]
    %v453 = vld [vmem:[%s449 + $0x18] sm:$0xff]
    %v454 = vld [vmem:[%s449 + $0x20] sm:$0xff]
    %v455 = vld [vmem:[%s449 + $0x28] sm:$0xff]
    %v456 = vld [vmem:[%s449 + $0x30] sm:$0xff]
    %v457 = vld [vmem:[%s449 + $0x38] sm:$0xff]
    %v458 = vld [vmem:[%s449 + $0x40] sm:$0x3f]
    %460 = vset.pattern.permute.xlu0 0
    %461 = vperm.xlu0 %460, %v450
    %v462 = vpop.permute.xlu0 %461
    %465 = vset.pattern.permute.xlu0 0
    %466 = vperm.xlu0 %465, %v451
    %v467 = vpop.permute.xlu0 %466
    %470 = vset.pattern.permute.xlu0 0
    %471 = vperm.xlu0 %470, %v452
    %v472 = vpop.permute.xlu0 %471
    %475 = vset.pattern.permute.xlu0 0
    %476 = vperm.xlu0 %475, %v453
    %v477 = vpop.permute.xlu0 %476
    %480 = vset.pattern.permute.xlu0 0
    %481 = vperm.xlu0 %480, %v454
    %v482 = vpop.permute.xlu0 %481
    %485 = vset.pattern.permute.xlu0 0
    %486 = vperm.xlu0 %485, %v455
    %v487 = vpop.permute.xlu0 %486
    %490 = vset.pattern.permute.xlu0 0
    %491 = vperm.xlu0 %490, %v456
    %v492 = vpop.permute.xlu0 %491
    %495 = vset.pattern.permute.xlu0 0
    %496 = vperm.xlu0 %495, %v457
    %v497 = vpop.permute.xlu0 %496
    %500 = vset.pattern.permute.xlu0 0
    %501 = vperm.xlu0 %500, %v458
    %v502 = vpop.permute.xlu0 %501
    %v505 = vsel %vm288, %v440, 0
    %v508 = vsel %vm288, %v441, 0
    %v511 = vsel %vm288, %v442, 0
    %v514 = vsel %vm288, %v443, 0
    %v517 = vsel %vm288, %v444, 0
    %v520 = vsel %vm288, %v445, 0
    %v523 = vsel %vm288, %v446, 0
    %v526 = vsel %vm288, %v447, 0
    %v529 = vsel %vm288, %v448, 0
    %v532 = vsel %vm316, %v438, 0
    %534 = vmatprep.subr.mxu0 0.0
    %535 = vmatpush1.msra.mxu0 %v430
    %536 = vmatprep.subr.mxu0 0.0
    %537 = vmatpush1.msra.mxu0 %v431
    %538 = vmatprep.subr.mxu0 0.0
    %539 = vmatpush1.msra.mxu0 %v432
    %540 = vmatprep.subr.mxu0 0.0
    %541 = vmatpush1.msra.mxu0 %v433
    %542 = vmatprep.subr.mxu0 0.0
    %543 = vmatpush1.msra.mxu0 %v434
    %544 = vmatprep.subr.mxu0 0.0
    %545 = vmatpush1.msra.mxu0 %v435
    %546 = vmatprep.subr.mxu0 0.0
    %547 = vmatpush1.msra.mxu0 %v436
    %548 = vmatprep.subr.mxu0 0.0
    %549 = vmatpush1.msra.mxu0 %v437
    %550 = vmatprep.subr.mxu0 0.0
    %551 = vmatpush1.msra.mxu0 %v532
    %552 = vmatprep.subr.mxu0 0.0
    %553 = vmatpush1.msra.mxu0 0.0
    %554 = vmatprep.subr.mxu0 0.0
    %555 = vmatpush1.msra.mxu0 0.0
    %556 = vmatprep.subr.mxu0 0.0
    %557 = vmatpush1.msra.mxu0 0.0
    %558 = vmatprep.subr.mxu0 0.0
    %559 = vmatpush1.msra.mxu0 0.0
    %560 = vmatprep.subr.mxu0 0.0
    %561 = vmatpush1.msra.mxu0 0.0
    %562 = vmatprep.subr.mxu0 0.0
    %563 = vmatpush1.msra.mxu0 0.0
    %564 = vmatprep.subr.mxu0 0.0
    %565 = vmatpush1.msra.mxu0 0.0
    %566 = vmatprep.subr.mxu0 0.0
    %567 = vmatpush1.msra.mxu0 0.0
    %568 = vmatprep.subr.mxu0 0.0
    %569 = vmatpush1.msra.mxu0 0.0
    %570 = vmatprep.subr.mxu0 0.0
    %571 = vmatpush1.msra.mxu0 0.0
    %572 = vmatprep.subr.mxu0 0.0
    %573 = vmatpush1.msra.mxu0 0.0
    %574 = vmatprep.subr.mxu0 0.0
    %575 = vmatpush1.msra.mxu0 0.0
    %576 = vmatprep.subr.mxu0 0.0
    %577 = vmatpush1.msra.mxu0 0.0
    %578 = vmatprep.subr.mxu0 0.0
    %579 = vmatpush1.msra.mxu0 0.0
    %580 = vmatprep.subr.mxu0 0.0
    %581 = vmatpush1.msra.mxu0 0.0
    %582 = vmatprep.subr.mxu0 0.0
    %583 = vmatpush1.msra.mxu0 0.0
    %584 = vmatprep.subr.mxu0 0.0
    %585 = vmatpush1.msra.mxu0 0.0
    %586 = vmatprep.subr.mxu0 0.0
    %587 = vmatpush1.msra.mxu0 0.0
    %588 = vmatprep.subr.mxu0 0.0
    %589 = vmatpush1.msra.mxu0 0.0
    %590 = vmatprep.subr.mxu0 0.0
    %591 = vmatpush1.msra.mxu0 0.0
    %592 = vmatprep.subr.mxu0 0.0
    %593 = vmatpush1.msra.mxu0 0.0
    %594 = vmatprep.subr.mxu0 0.0
    %595 = vmatpush1.msra.mxu0 0.0
    %596 = vmatprep.subr.mxu0 0.0
    %597 = vmatpush1.msra.mxu0 0.0
    %598 = vmatprep.mubr.f32.mxu0 0.0
    %599 = vmatmul.mubr.f32.gmra.mrb[0].mxu0 %v505
    %v600 = vpop.f32.mrb[0].mxu0
    %v601 = vadd.f32 %v462, %v600
    %v602 = vpop.f32.mrb[0].mxu0
    %603 = vmatprep.mubr.f32.mxu0 0.0
    %604 = vmatmul.mubr.f32.gmra.mrb[0].mxu0 %v508
    %v605 = vpop.f32.mrb[0].mxu0
    %v606 = vadd.f32 %v467, %v605
    %v607 = vpop.f32.mrb[0].mxu0
    %608 = vmatprep.mubr.f32.mxu0 0.0
    %609 = vmatmul.mubr.f32.gmra.mrb[0].mxu0 %v511
    %v610 = vpop.f32.mrb[0].mxu0
    %v611 = vadd.f32 %v472, %v610
    %v612 = vpop.f32.mrb[0].mxu0
    %613 = vmatprep.mubr.f32.mxu0 0.0
    %614 = vmatmul.mubr.f32.gmra.mrb[0].mxu0 %v514
    %v615 = vpop.f32.mrb[0].mxu0
    %v616 = vadd.f32 %v477, %v615
    %v617 = vpop.f32.mrb[0].mxu0
    %618 = vmatprep.mubr.f32.mxu0 0.0
    %619 = vmatmul.mubr.f32.gmra.mrb[0].mxu0 %v517
    %v620 = vpop.f32.mrb[0].mxu0
    %v621 = vadd.f32 %v482, %v620
    %v622 = vpop.f32.mrb[0].mxu0
    %623 = vmatprep.mubr.f32.mxu0 0.0
    %624 = vmatmul.mubr.f32.gmra.mrb[0].mxu0 %v520
    %v625 = vpop.f32.mrb[0].mxu0
    %v626 = vadd.f32 %v487, %v625
    %v627 = vpop.f32.mrb[0].mxu0
    %628 = vmatprep.mubr.f32.mxu0 0.0
    %629 = vmatmul.mubr.f32.gmra.mrb[0].mxu0 %v523
    %v630 = vpop.f32.mrb[0].mxu0
    %v631 = vadd.f32 %v492, %v630
    %v632 = vpop.f32.mrb[0].mxu0
    %633 = vmatprep.mubr.f32.mxu0 0.0
    %634 = vmatmul.mubr.f32.gmra.mrb[0].mxu0 %v526
    %v635 = vpop.f32.mrb[0].mxu0
    %v636 = vadd.f32 %v497, %v635
    %v637 = vpop.f32.mrb[0].mxu0
    %638 = vmatprep.mubr.f32.mxu0 0.0
    %639 = vmatmul.mubr.f32.gmra.mrb[0].mxu0 %v529
    %v640 = vpop.f32.mrb[0].mxu0
    %v641 = vadd.f32 %v502, %v640
    %v642 = vpop.f32.mrb[0].mxu0
    %643 = vdwg.mxu0
    %v644 = vtanh.pop %v601
    %v645 = vtanh.pop %v606
    %v646 = vtanh.pop %v611
    %v647 = vtanh.pop %v616
    %v648 = vtanh.pop %v621
    %v649 = vtanh.pop %v626
    %v650 = vtanh.pop %v631
    %v651 = vtanh.pop %v636
    %v652 = vtanh.pop %v641
    %s653 = scalar_lea.vmem %s3, 144
    %v654 = vld [vmem:[%s653] sm:$0xff]
    %v655 = vld [vmem:[%s653 + $0x8] sm:$0xff]
    %v656 = vld [vmem:[%s653 + $0x10] sm:$0xff]
    %v657 = vld [vmem:[%s653 + $0x18] sm:$0xff]
    %v658 = vld [vmem:[%s653 + $0x20] sm:$0xff]
    %v659 = vld [vmem:[%s653 + $0x28] sm:$0xff]
    %v660 = vld [vmem:[%s653 + $0x30] sm:$0xff]
    %v661 = vld [vmem:[%s653 + $0x38] sm:$0xff]
    %v662 = vld [vmem:[%s653 + $0x40] sm:$0x3f]
    %s663 = scalar_lea.vmem %s4, 144
    %v664 = vld [vmem:[%s663] sm:$0xff]
    %v665 = vld [vmem:[%s663 + $0x8] sm:$0xff]
    %v666 = vld [vmem:[%s663 + $0x10] sm:$0xff]
    %v667 = vld [vmem:[%s663 + $0x18] sm:$0xff]
    %v668 = vld [vmem:[%s663 + $0x20] sm:$0xff]
    %v669 = vld [vmem:[%s663 + $0x28] sm:$0xff]
    %v670 = vld [vmem:[%s663 + $0x30] sm:$0xff]
    %v671 = vld [vmem:[%s663 + $0x38] sm:$0xff]
    %v672 = vld [vmem:[%s663 + $0x40] sm:$0x3f]
    %674 = vset.pattern.permute.xlu0 0
    %675 = vperm.xlu0 %674, %v664
    %v676 = vpop.permute.xlu0 %675
    %679 = vset.pattern.permute.xlu0 0
    %680 = vperm.xlu0 %679, %v665
    %v681 = vpop.permute.xlu0 %680
    %684 = vset.pattern.permute.xlu0 0
    %685 = vperm.xlu0 %684, %v666
    %v686 = vpop.permute.xlu0 %685
    %689 = vset.pattern.permute.xlu0 0
    %690 = vperm.xlu0 %689, %v667
    %v691 = vpop.permute.xlu0 %690
    %694 = vset.pattern.permute.xlu0 0
    %695 = vperm.xlu0 %694, %v668
    %v696 = vpop.permute.xlu0 %695
    %699 = vset.pattern.permute.xlu0 0
    %700 = vperm.xlu0 %699, %v669
    %v701 = vpop.permute.xlu0 %700
    %704 = vset.pattern.permute.xlu0 0
    %705 = vperm.xlu0 %704, %v670
    %v706 = vpop.permute.xlu0 %705
    %709 = vset.pattern.permute.xlu0 0
    %710 = vperm.xlu0 %709, %v671
    %v711 = vpop.permute.xlu0 %710
    %714 = vset.pattern.permute.xlu0 0
    %715 = vperm.xlu0 %714, %v672
    %v716 = vpop.permute.xlu0 %715
    %v719 = vsel %vm288, %v654, 0
    %v722 = vsel %vm288, %v655, 0
    %v725 = vsel %vm288, %v656, 0
    %v728 = vsel %vm288, %v657, 0
    %v731 = vsel %vm288, %v658, 0
    %v734 = vsel %vm288, %v659, 0
    %v737 = vsel %vm288, %v660, 0
    %v740 = vsel %vm288, %v661, 0
    %v743 = vsel %vm288, %v662, 0
    %v746 = vsel %vm316, %v652, 0
    %748 = vmatprep.subr.mxu0 0.0
    %749 = vmatpush1.msra.mxu0 %v644
    %750 = vmatprep.subr.mxu0 0.0
    %751 = vmatpush1.msra.mxu0 %v645
    %752 = vmatprep.subr.mxu0 0.0
    %753 = vmatpush1.msra.mxu0 %v646
    %754 = vmatprep.subr.mxu0 0.0
    %755 = vmatpush1.msra.mxu0 %v647
    %756 = vmatprep.subr.mxu0 0.0
    %757 = vmatpush1.msra.mxu0 %v648
    %758 = vmatprep.subr.mxu0 0.0
    %759 = vmatpush1.msra.mxu0 %v649
    %760 = vmatprep.subr.mxu0 0.0
    %761 = vmatpush1.msra.mxu0 %v650
    %762 = vmatprep.subr.mxu0 0.0
    %763 = vmatpush1.msra.mxu0 %v651
    %764 = vmatprep.subr.mxu0 0.0
    %765 = vmatpush1.msra.mxu0 %v746
    %766 = vmatprep.subr.mxu0 0.0
    %767 = vmatpush1.msra.mxu0 0.0
    %768 = vmatprep.subr.mxu0 0.0
    %769 = vmatpush1.msra.mxu0 0.0
    %770 = vmatprep.subr.mxu0 0.0
    %771 = vmatpush1.msra.mxu0 0.0
    %772 = vmatprep.subr.mxu0 0.0
    %773 = vmatpush1.msra.mxu0 0.0
    %774 = vmatprep.subr.mxu0 0.0
    %775 = vmatpush1.msra.mxu0 0.0
    %776 = vmatprep.subr.mxu0 0.0
    %777 = vmatpush1.msra.mxu0 0.0
    %778 = vmatprep.subr.mxu0 0.0
    %779 = vmatpush1.msra.mxu0 0.0
    %780 = vmatprep.subr.mxu0 0.0
    %781 = vmatpush1.msra.mxu0 0.0
    %782 = vmatprep.subr.mxu0 0.0
    %783 = vmatpush1.msra.mxu0 0.0
    %784 = vmatprep.subr.mxu0 0.0
    %785 = vmatpush1.msra.mxu0 0.0
    %786 = vmatprep.subr.mxu0 0.0
    %787 = vmatpush1.msra.mxu0 0.0
    %788 = vmatprep.subr.mxu0 0.0
    %789 = vmatpush1.msra.mxu0 0.0
    %790 = vmatprep.subr.mxu0 0.0
    %791 = vmatpush1.msra.mxu0 0.0
    %792 = vmatprep.subr.mxu0 0.0
    %793 = vmatpush1.msra.mxu0 0.0
    %794 = vmatprep.subr.mxu0 0.0
    %795 = vmatpush1.msra.mxu0 0.0
    %796 = vmatprep.subr.mxu0 0.0
    %797 = vmatpush1.msra.mxu0 0.0
    %798 = vmatprep.subr.mxu0 0.0
    %799 = vmatpush1.msra.mxu0 0.0
    %800 = vmatprep.subr.mxu0 0.0
    %801 = vmatpush1.msra.mxu0 0.0
    %802 = vmatprep.subr.mxu0 0.0
    %803 = vmatpush1.msra.mxu0 0.0
    %804 = vmatprep.subr.mxu0 0.0
    %805 = vmatpush1.msra.mxu0 0.0
    %806 = vmatprep.subr.mxu0 0.0
    %807 = vmatpush1.msra.mxu0 0.0
    %808 = vmatprep.subr.mxu0 0.0
    %809 = vmatpush1.msra.mxu0 0.0
    %810 = vmatprep.subr.mxu0 0.0
    %811 = vmatpush1.msra.mxu0 0.0
    %812 = vmatprep.mubr.f32.mxu0 0.0
    %813 = vmatmul.mubr.f32.gmra.mrb[0].mxu0 %v719
    %v814 = vpop.f32.mrb[0].mxu0
    %v815 = vadd.f32 %v676, %v814
    %v816 = vpop.f32.mrb[0].mxu0
    %817 = vmatprep.mubr.f32.mxu0 0.0
    %818 = vmatmul.mubr.f32.gmra.mrb[0].mxu0 %v722
    %v819 = vpop.f32.mrb[0].mxu0
    %v820 = vadd.f32 %v681, %v819
    %v821 = vpop.f32.mrb[0].mxu0
    %822 = vmatprep.mubr.f32.mxu0 0.0
    %823 = vmatmul.mubr.f32.gmra.mrb[0].mxu0 %v725
    %v824 = vpop.f32.mrb[0].mxu0
    %v825 = vadd.f32 %v686, %v824
    %v826 = vpop.f32.mrb[0].mxu0
    %827 = vmatprep.mubr.f32.mxu0 0.0
    %828 = vmatmul.mubr.f32.gmra.mrb[0].mxu0 %v728
    %v829 = vpop.f32.mrb[0].mxu0
    %v830 = vadd.f32 %v691, %v829
    %v831 = vpop.f32.mrb[0].mxu0
    %832 = vmatprep.mubr.f32.mxu0 0.0
    %833 = vmatmul.mubr.f32.gmra.mrb[0].mxu0 %v731
    %v834 = vpop.f32.mrb[0].mxu0
    %v835 = vadd.f32 %v696, %v834
    %v836 = vpop.f32.mrb[0].mxu0
    %837 = vmatprep.mubr.f32.mxu0 0.0
    %838 = vmatmul.mubr.f32.gmra.mrb[0].mxu0 %v734
    %v839 = vpop.f32.mrb[0].mxu0
    %v840 = vadd.f32 %v701, %v839
    %v841 = vpop.f32.mrb[0].mxu0
    %842 = vmatprep.mubr.f32.mxu0 0.0
    %843 = vmatmul.mubr.f32.gmra.mrb[0].mxu0 %v737
    %v844 = vpop.f32.mrb[0].mxu0
    %v845 = vadd.f32 %v706, %v844
    %v846 = vpop.f32.mrb[0].mxu0
    %847 = vmatprep.mubr.f32.mxu0 0.0
    %848 = vmatmul.mubr.f32.gmra.mrb[0].mxu0 %v740
    %v849 = vpop.f32.mrb[0].mxu0
    %v850 = vadd.f32 %v711, %v849
    %v851 = vpop.f32.mrb[0].mxu0
    %852 = vmatprep.mubr.f32.mxu0 0.0
    %853 = vmatmul.mubr.f32.gmra.mrb[0].mxu0 %v743
    %v854 = vpop.f32.mrb[0].mxu0
    %v855 = vadd.f32 %v716, %v854
    %v856 = vpop.f32.mrb[0].mxu0
    %857 = vdwg.mxu0
    %v858 = vtanh.pop %v815
    %v859 = vtanh.pop %v820
    %v860 = vtanh.pop %v825
    %v861 = vtanh.pop %v830
    %v862 = vtanh.pop %v835
    %v863 = vtanh.pop %v840
    %v864 = vtanh.pop %v845
    %v865 = vtanh.pop %v850
    %v866 = vtanh.pop %v855
    %s867 = scalar_lea.vmem %s3, 216
    %v868 = vld [vmem:[%s867] sm:$0xff]
    %v869 = vld [vmem:[%s867 + $0x8] sm:$0xff]
    %v870 = vld [vmem:[%s867 + $0x10] sm:$0xff]
    %v871 = vld [vmem:[%s867 + $0x18] sm:$0xff]
    %v872 = vld [vmem:[%s867 + $0x20] sm:$0xff]
    %v873 = vld [vmem:[%s867 + $0x28] sm:$0xff]
    %v874 = vld [vmem:[%s867 + $0x30] sm:$0xff]
    %v875 = vld [vmem:[%s867 + $0x38] sm:$0xff]
    %v876 = vld [vmem:[%s867 + $0x40] sm:$0x3f]
    %s877 = scalar_lea.vmem %s4, 216
    %v878 = vld [vmem:[%s877] sm:$0xff]
    %v879 = vld [vmem:[%s877 + $0x8] sm:$0xff]
    %v880 = vld [vmem:[%s877 + $0x10] sm:$0xff]
    %v881 = vld [vmem:[%s877 + $0x18] sm:$0xff]
    %v882 = vld [vmem:[%s877 + $0x20] sm:$0xff]
    %v883 = vld [vmem:[%s877 + $0x28] sm:$0xff]
    %v884 = vld [vmem:[%s877 + $0x30] sm:$0xff]
    %v885 = vld [vmem:[%s877 + $0x38] sm:$0xff]
    %v886 = vld [vmem:[%s877 + $0x40] sm:$0x3f]
    %888 = vset.pattern.permute.xlu0 0
    %889 = vperm.xlu0 %888, %v878
    %v890 = vpop.permute.xlu0 %889
    %893 = vset.pattern.permute.xlu0 0
    %894 = vperm.xlu0 %893, %v879
    %v895 = vpop.permute.xlu0 %894
    %898 = vset.pattern.permute.xlu0 0
    %899 = vperm.xlu0 %898, %v880
    %v900 = vpop.permute.xlu0 %899
    %903 = vset.pattern.permute.xlu0 0
    %904 = vperm.xlu0 %903, %v881
    %v905 = vpop.permute.xlu0 %904
    %908 = vset.pattern.permute.xlu0 0
    %909 = vperm.xlu0 %908, %v882
    %v910 = vpop.permute.xlu0 %909
    %913 = vset.pattern.permute.xlu0 0
    %914 = vperm.xlu0 %913, %v883
    %v915 = vpop.permute.xlu0 %914
    %918 = vset.pattern.permute.xlu0 0
    %919 = vperm.xlu0 %918, %v884
    %v920 = vpop.permute.xlu0 %919
    %923 = vset.pattern.permute.xlu0 0
    %924 = vperm.xlu0 %923, %v885
    %v925 = vpop.permute.xlu0 %924
    %928 = vset.pattern.permute.xlu0 0
    %929 = vperm.xlu0 %928, %v886
    %v930 = vpop.permute.xlu0 %929
    %v933 = vsel %vm288, %v868, 0
    %v936 = vsel %vm288, %v869, 0
    %v939 = vsel %vm288, %v870, 0
    %v942 = vsel %vm288, %v871, 0
    %v945 = vsel %vm288, %v872, 0
    %v948 = vsel %vm288, %v873, 0
    %v951 = vsel %vm288, %v874, 0
    %v954 = vsel %vm288, %v875, 0
    %v957 = vsel %vm288, %v876, 0
    %v960 = vsel %vm316, %v866, 0
    %962 = vmatprep.subr.mxu0 0.0
    %963 = vmatpush1.msra.mxu0 %v858
    %964 = vmatprep.subr.mxu0 0.0
    %965 = vmatpush1.msra.mxu0 %v859
    %966 = vmatprep.subr.mxu0 0.0
    %967 = vmatpush1.msra.mxu0 %v860
    %968 = vmatprep.subr.mxu0 0.0
    %969 = vmatpush1.msra.mxu0 %v861
    %970 = vmatprep.subr.mxu0 0.0
    %971 = vmatpush1.msra.mxu0 %v862
    %972 = vmatprep.subr.mxu0 0.0
    %973 = vmatpush1.msra.mxu0 %v863
    %974 = vmatprep.subr.mxu0 0.0
    %975 = vmatpush1.msra.mxu0 %v864
    %976 = vmatprep.subr.mxu0 0.0
    %977 = vmatpush1.msra.mxu0 %v865
    %978 = vmatprep.subr.mxu0 0.0
    %979 = vmatpush1.msra.mxu0 %v960
    %980 = vmatprep.subr.mxu0 0.0
    %981 = vmatpush1.msra.mxu0 0.0
    %982 = vmatprep.subr.mxu0 0.0
    %983 = vmatpush1.msra.mxu0 0.0
    %984 = vmatprep.subr.mxu0 0.0
    %985 = vmatpush1.msra.mxu0 0.0
    %986 = vmatprep.subr.mxu0 0.0
    %987 = vmatpush1.msra.mxu0 0.0
    %988 = vmatprep.subr.mxu0 0.0
    %989 = vmatpush1.msra.mxu0 0.0
    %990 = vmatprep.subr.mxu0 0.0
    %991 = vmatpush1.msra.mxu0 0.0
    %992 = vmatprep.subr.mxu0 0.0
    %993 = vmatpush1.msra.mxu0 0.0
    %994 = vmatprep.subr.mxu0 0.0
    %995 = vmatpush1.msra.mxu0 0.0
    %996 = vmatprep.subr.mxu0 0.0
    %997 = vmatpush1.msra.mxu0 0.0
    %998 = vmatprep.subr.mxu0 0.0
    %999 = vmatpush1.msra.mxu0 0.0
    %1000 = vmatprep.subr.mxu0 0.0
    %1001 = vmatpush1.msra.mxu0 0.0
    %1002 = vmatprep.subr.mxu0 0.0
    %1003 = vmatpush1.msra.mxu0 0.0
    %1004 = vmatprep.subr.mxu0 0.0
    %1005 = vmatpush1.msra.mxu0 0.0
    %1006 = vmatprep.subr.mxu0 0.0
    %1007 = vmatpush1.msra.mxu0 0.0
    %1008 = vmatprep.subr.mxu0 0.0
    %1009 = vmatpush1.msra.mxu0 0.0
    %1010 = vmatprep.subr.mxu0 0.0
    %1011 = vmatpush1.msra.mxu0 0.0
    %1012 = vmatprep.subr.mxu0 0.0
    %1013 = vmatpush1.msra.mxu0 0.0
    %1014 = vmatprep.subr.mxu0 0.0
    %1015 = vmatpush1.msra.mxu0 0.0
    %1016 = vmatprep.subr.mxu0 0.0
    %1017 = vmatpush1.msra.mxu0 0.0
    %1018 = vmatprep.subr.mxu0 0.0
    %1019 = vmatpush1.msra.mxu0 0.0
    %1020 = vmatprep.subr.mxu0 0.0
    %1021 = vmatpush1.msra.mxu0 0.0
    %1022 = vmatprep.subr.mxu0 0.0
    %1023 = vmatpush1.msra.mxu0 0.0
    %1024 = vmatprep.subr.mxu0 0.0
    %1025 = vmatpush1.msra.mxu0 0.0
    %1026 = vmatprep.mubr.f32.mxu0 0.0
    %1027 = vmatmul.mubr.f32.gmra.mrb[0].mxu0 %v933
    %v1028 = vpop.f32.mrb[0].mxu0
    %v1029 = vadd.f32 %v890, %v1028
    %v1030 = vpop.f32.mrb[0].mxu0
    %1031 = vmatprep.mubr.f32.mxu0 0.0
    %1032 = vmatmul.mubr.f32.gmra.mrb[0].mxu0 %v936
    %v1033 = vpop.f32.mrb[0].mxu0
    %v1034 = vadd.f32 %v895, %v1033
    %v1035 = vpop.f32.mrb[0].mxu0
    %1036 = vmatprep.mubr.f32.mxu0 0.0
    %1037 = vmatmul.mubr.f32.gmra.mrb[0].mxu0 %v939
    %v1038 = vpop.f32.mrb[0].mxu0
    %v1039 = vadd.f32 %v900, %v1038
    %v1040 = vpop.f32.mrb[0].mxu0
    %1041 = vmatprep.mubr.f32.mxu0 0.0
    %1042 = vmatmul.mubr.f32.gmra.mrb[0].mxu0 %v942
    %v1043 = vpop.f32.mrb[0].mxu0
    %v1044 = vadd.f32 %v905, %v1043
    %v1045 = vpop.f32.mrb[0].mxu0
    %1046 = vmatprep.mubr.f32.mxu0 0.0
    %1047 = vmatmul.mubr.f32.gmra.mrb[0].mxu0 %v945
    %v1048 = vpop.f32.mrb[0].mxu0
    %v1049 = vadd.f32 %v910, %v1048
    %v1050 = vpop.f32.mrb[0].mxu0
    %1051 = vmatprep.mubr.f32.mxu0 0.0
    %1052 = vmatmul.mubr.f32.gmra.mrb[0].mxu0 %v948
    %v1053 = vpop.f32.mrb[0].mxu0
    %v1054 = vadd.f32 %v915, %v1053
    %v1055 = vpop.f32.mrb[0].mxu0
    %1056 = vmatprep.mubr.f32.mxu0 0.0
    %1057 = vmatmul.mubr.f32.gmra.mrb[0].mxu0 %v951
    %v1058 = vpop.f32.mrb[0].mxu0
    %v1059 = vadd.f32 %v920, %v1058
    %v1060 = vpop.f32.mrb[0].mxu0
    %1061 = vmatprep.mubr.f32.mxu0 0.0
    %1062 = vmatmul.mubr.f32.gmra.mrb[0].mxu0 %v954
    %v1063 = vpop.f32.mrb[0].mxu0
    %v1064 = vadd.f32 %v925, %v1063
    %v1065 = vpop.f32.mrb[0].mxu0
    %1066 = vmatprep.mubr.f32.mxu0 0.0
    %1067 = vmatmul.mubr.f32.gmra.mrb[0].mxu0 %v957
    %v1068 = vpop.f32.mrb[0].mxu0
    %v1069 = vadd.f32 %v930, %v1068
    %v1070 = vpop.f32.mrb[0].mxu0
    %1071 = vdwg.mxu0
    %v1072 = vtanh.pop %v1029
    %v1073 = vtanh.pop %v1034
    %v1074 = vtanh.pop %v1039
    %v1075 = vtanh.pop %v1044
    %v1076 = vtanh.pop %v1049
    %v1077 = vtanh.pop %v1054
    %v1078 = vtanh.pop %v1059
    %v1079 = vtanh.pop %v1064
    %v1080 = vtanh.pop %v1069
    %s1081 = scalar_lea.vmem %s3, 288
    %v1082 = vld [vmem:[%s1081] sm:$0xff]
    %v1083 = vld [vmem:[%s1081 + $0x8] sm:$0xff]
    %v1084 = vld [vmem:[%s1081 + $0x10] sm:$0xff]
    %v1085 = vld [vmem:[%s1081 + $0x18] sm:$0xff]
    %v1086 = vld [vmem:[%s1081 + $0x20] sm:$0xff]
    %v1087 = vld [vmem:[%s1081 + $0x28] sm:$0xff]
    %v1088 = vld [vmem:[%s1081 + $0x30] sm:$0xff]
    %v1089 = vld [vmem:[%s1081 + $0x38] sm:$0xff]
    %v1090 = vld [vmem:[%s1081 + $0x40] sm:$0x3f]
    %s1091 = scalar_lea.vmem %s4, 288
    %v1092 = vld [vmem:[%s1091] sm:$0xff]
    %v1093 = vld [vmem:[%s1091 + $0x8] sm:$0xff]
    %v1094 = vld [vmem:[%s1091 + $0x10] sm:$0xff]
    %v1095 = vld [vmem:[%s1091 + $0x18] sm:$0xff]
    %v1096 = vld [vmem:[%s1091 + $0x20] sm:$0xff]
    %v1097 = vld [vmem:[%s1091 + $0x28] sm:$0xff]
    %v1098 = vld [vmem:[%s1091 + $0x30] sm:$0xff]
    %v1099 = vld [vmem:[%s1091 + $0x38] sm:$0xff]
    %v1100 = vld [vmem:[%s1091 + $0x40] sm:$0x3f]
    %1102 = vset.pattern.permute.xlu0 0
    %1103 = vperm.xlu0 %1102, %v1092
    %v1104 = vpop.permute.xlu0 %1103
    %1107 = vset.pattern.permute.xlu0 0
    %1108 = vperm.xlu0 %1107, %v1093
    %v1109 = vpop.permute.xlu0 %1108
    %1112 = vset.pattern.permute.xlu0 0
    %1113 = vperm.xlu0 %1112, %v1094
    %v1114 = vpop.permute.xlu0 %1113
    %1117 = vset.pattern.permute.xlu0 0
    %1118 = vperm.xlu0 %1117, %v1095
    %v1119 = vpop.permute.xlu0 %1118
    %1122 = vset.pattern.permute.xlu0 0
    %1123 = vperm.xlu0 %1122, %v1096
    %v1124 = vpop.permute.xlu0 %1123
    %1127 = vset.pattern.permute.xlu0 0
    %1128 = vperm.xlu0 %1127, %v1097
    %v1129 = vpop.permute.xlu0 %1128
    %1132 = vset.pattern.permute.xlu0 0
    %1133 = vperm.xlu0 %1132, %v1098
    %v1134 = vpop.permute.xlu0 %1133
    %1137 = vset.pattern.permute.xlu0 0
    %1138 = vperm.xlu0 %1137, %v1099
    %v1139 = vpop.permute.xlu0 %1138
    %1142 = vset.pattern.permute.xlu0 0
    %1143 = vperm.xlu0 %1142, %v1100
    %v1144 = vpop.permute.xlu0 %1143
    %v1147 = vsel %vm288, %v1082, 0
    %v1150 = vsel %vm288, %v1083, 0
    %v1153 = vsel %vm288, %v1084, 0
    %v1156 = vsel %vm288, %v1085, 0
    %v1159 = vsel %vm288, %v1086, 0
    %v1162 = vsel %vm288, %v1087, 0
    %v1165 = vsel %vm288, %v1088, 0
    %v1168 = vsel %vm288, %v1089, 0
    %v1171 = vsel %vm288, %v1090, 0
    %v1174 = vsel %vm316, %v1080, 0
    %1176 = vmatprep.subr.mxu0 0.0
    %1177 = vmatpush1.msra.mxu0 %v1072
    %1178 = vmatprep.subr.mxu0 0.0
    %1179 = vmatpush1.msra.mxu0 %v1073
    %1180 = vmatprep.subr.mxu0 0.0
    %1181 = vmatpush1.msra.mxu0 %v1074
    %1182 = vmatprep.subr.mxu0 0.0
    %1183 = vmatpush1.msra.mxu0 %v1075
    %1184 = vmatprep.subr.mxu0 0.0
    %1185 = vmatpush1.msra.mxu0 %v1076
    %1186 = vmatprep.subr.mxu0 0.0
    %1187 = vmatpush1.msra.mxu0 %v1077
    %1188 = vmatprep.subr.mxu0 0.0
    %1189 = vmatpush1.msra.mxu0 %v1078
    %1190 = vmatprep.subr.mxu0 0.0
    %1191 = vmatpush1.msra.mxu0 %v1079
    %1192 = vmatprep.subr.mxu0 0.0
    %1193 = vmatpush1.msra.mxu0 %v1174
    %1194 = vmatprep.subr.mxu0 0.0
    %1195 = vmatpush1.msra.mxu0 0.0
    %1196 = vmatprep.subr.mxu0 0.0
    %1197 = vmatpush1.msra.mxu0 0.0
    %1198 = vmatprep.subr.mxu0 0.0
    %1199 = vmatpush1.msra.mxu0 0.0
    %1200 = vmatprep.subr.mxu0 0.0
    %1201 = vmatpush1.msra.mxu0 0.0
    %1202 = vmatprep.subr.mxu0 0.0
    %1203 = vmatpush1.msra.mxu0 0.0
    %1204 = vmatprep.subr.mxu0 0.0
    %1205 = vmatpush1.msra.mxu0 0.0
    %1206 = vmatprep.subr.mxu0 0.0
    %1207 = vmatpush1.msra.mxu0 0.0
    %1208 = vmatprep.subr.mxu0 0.0
    %1209 = vmatpush1.msra.mxu0 0.0
    %1210 = vmatprep.subr.mxu0 0.0
    %1211 = vmatpush1.msra.mxu0 0.0
    %1212 = vmatprep.subr.mxu0 0.0
    %1213 = vmatpush1.msra.mxu0 0.0
    %1214 = vmatprep.subr.mxu0 0.0
    %1215 = vmatpush1.msra.mxu0 0.0
    %1216 = vmatprep.subr.mxu0 0.0
    %1217 = vmatpush1.msra.mxu0 0.0
    %1218 = vmatprep.subr.mxu0 0.0
    %1219 = vmatpush1.msra.mxu0 0.0
    %1220 = vmatprep.subr.mxu0 0.0
    %1221 = vmatpush1.msra.mxu0 0.0
    %1222 = vmatprep.subr.mxu0 0.0
    %1223 = vmatpush1.msra.mxu0 0.0
    %1224 = vmatprep.subr.mxu0 0.0
    %1225 = vmatpush1.msra.mxu0 0.0
    %1226 = vmatprep.subr.mxu0 0.0
    %1227 = vmatpush1.msra.mxu0 0.0
    %1228 = vmatprep.subr.mxu0 0.0
    %1229 = vmatpush1.msra.mxu0 0.0
    %1230 = vmatprep.subr.mxu0 0.0
    %1231 = vmatpush1.msra.mxu0 0.0
    %1232 = vmatprep.subr.mxu0 0.0
    %1233 = vmatpush1.msra.mxu0 0.0
    %1234 = vmatprep.subr.mxu0 0.0
    %1235 = vmatpush1.msra.mxu0 0.0
    %1236 = vmatprep.subr.mxu0 0.0
    %1237 = vmatpush1.msra.mxu0 0.0
    %1238 = vmatprep.subr.mxu0 0.0
    %1239 = vmatpush1.msra.mxu0 0.0
    %1240 = vmatprep.mubr.f32.mxu0 0.0
    %1241 = vmatmul.mubr.f32.gmra.mrb[0].mxu0 %v1147
    %v1242 = vpop.f32.mrb[0].mxu0
    %v1243 = vadd.f32 %v1104, %v1242
    %v1244 = vpop.f32.mrb[0].mxu0
    %1245 = vmatprep.mubr.f32.mxu0 0.0
    %1246 = vmatmul.mubr.f32.gmra.mrb[0].mxu0 %v1150
    %v1247 = vpop.f32.mrb[0].mxu0
    %v1248 = vadd.f32 %v1109, %v1247
    %v1249 = vpop.f32.mrb[0].mxu0
    %1250 = vmatprep.mubr.f32.mxu0 0.0
    %1251 = vmatmul.mubr.f32.gmra.mrb[0].mxu0 %v1153
    %v1252 = vpop.f32.mrb[0].mxu0
    %v1253 = vadd.f32 %v1114, %v1252
    %v1254 = vpop.f32.mrb[0].mxu0
    %1255 = vmatprep.mubr.f32.mxu0 0.0
    %1256 = vmatmul.mubr.f32.gmra.mrb[0].mxu0 %v1156
    %v1257 = vpop.f32.mrb[0].mxu0
    %v1258 = vadd.f32 %v1119, %v1257
    %v1259 = vpop.f32.mrb[0].mxu0
    %1260 = vmatprep.mubr.f32.mxu0 0.0
    %1261 = vmatmul.mubr.f32.gmra.mrb[0].mxu0 %v1159
    %v1262 = vpop.f32.mrb[0].mxu0
    %v1263 = vadd.f32 %v1124, %v1262
    %v1264 = vpop.f32.mrb[0].mxu0
    %1265 = vmatprep.mubr.f32.mxu0 0.0
    %1266 = vmatmul.mubr.f32.gmra.mrb[0].mxu0 %v1162
    %v1267 = vpop.f32.mrb[0].mxu0
    %v1268 = vadd.f32 %v1129, %v1267
    %v1269 = vpop.f32.mrb[0].mxu0
    %1270 = vmatprep.mubr.f32.mxu0 0.0
    %1271 = vmatmul.mubr.f32.gmra.mrb[0].mxu0 %v1165
    %v1272 = vpop.f32.mrb[0].mxu0
    %v1273 = vadd.f32 %v1134, %v1272
    %v1274 = vpop.f32.mrb[0].mxu0
    %1275 = vmatprep.mubr.f32.mxu0 0.0
    %1276 = vmatmul.mubr.f32.gmra.mrb[0].mxu0 %v1168
    %v1277 = vpop.f32.mrb[0].mxu0
    %v1278 = vadd.f32 %v1139, %v1277
    %v1279 = vpop.f32.mrb[0].mxu0
    %1280 = vmatprep.mubr.f32.mxu0 0.0
    %1281 = vmatmul.mubr.f32.gmra.mrb[0].mxu0 %v1171
    %v1282 = vpop.f32.mrb[0].mxu0
    %v1283 = vadd.f32 %v1144, %v1282
    %v1284 = vpop.f32.mrb[0].mxu0
    %1285 = vdwg.mxu0
    %v1286 = vtanh.pop %v1243
    %v1287 = vtanh.pop %v1248
    %v1288 = vtanh.pop %v1253
    %v1289 = vtanh.pop %v1258
    %v1290 = vtanh.pop %v1263
    %v1291 = vtanh.pop %v1268
    %v1292 = vtanh.pop %v1273
    %v1293 = vtanh.pop %v1278
    %v1294 = vtanh.pop %v1283
    %s1295 = scalar_lea.vmem %s3, 360
    %v1296 = vld [vmem:[%s1295] sm:$0xff]
    %v1297 = vld [vmem:[%s1295 + $0x8] sm:$0xff]
    %v1298 = vld [vmem:[%s1295 + $0x10] sm:$0xff]
    %v1299 = vld [vmem:[%s1295 + $0x18] sm:$0xff]
    %v1300 = vld [vmem:[%s1295 + $0x20] sm:$0xff]
    %v1301 = vld [vmem:[%s1295 + $0x28] sm:$0xff]
    %v1302 = vld [vmem:[%s1295 + $0x30] sm:$0xff]
    %v1303 = vld [vmem:[%s1295 + $0x38] sm:$0xff]
    %v1304 = vld [vmem:[%s1295 + $0x40] sm:$0x3f]
    %s1305 = scalar_lea.vmem %s4, 360
    %v1306 = vld [vmem:[%s1305] sm:$0xff]
    %v1307 = vld [vmem:[%s1305 + $0x8] sm:$0xff]
    %v1308 = vld [vmem:[%s1305 + $0x10] sm:$0xff]
    %v1309 = vld [vmem:[%s1305 + $0x18] sm:$0xff]
    %v1310 = vld [vmem:[%s1305 + $0x20] sm:$0xff]
    %v1311 = vld [vmem:[%s1305 + $0x28] sm:$0xff]
    %v1312 = vld [vmem:[%s1305 + $0x30] sm:$0xff]
    %v1313 = vld [vmem:[%s1305 + $0x38] sm:$0xff]
    %v1314 = vld [vmem:[%s1305 + $0x40] sm:$0x3f]
    %1316 = vset.pattern.permute.xlu0 0
    %1317 = vperm.xlu0 %1316, %v1306
    %v1318 = vpop.permute.xlu0 %1317
    %1321 = vset.pattern.permute.xlu0 0
    %1322 = vperm.xlu0 %1321, %v1307
    %v1323 = vpop.permute.xlu0 %1322
    %1326 = vset.pattern.permute.xlu0 0
    %1327 = vperm.xlu0 %1326, %v1308
    %v1328 = vpop.permute.xlu0 %1327
    %1331 = vset.pattern.permute.xlu0 0
    %1332 = vperm.xlu0 %1331, %v1309
    %v1333 = vpop.permute.xlu0 %1332
    %1336 = vset.pattern.permute.xlu0 0
    %1337 = vperm.xlu0 %1336, %v1310
    %v1338 = vpop.permute.xlu0 %1337
    %1341 = vset.pattern.permute.xlu0 0
    %1342 = vperm.xlu0 %1341, %v1311
    %v1343 = vpop.permute.xlu0 %1342
    %1346 = vset.pattern.permute.xlu0 0
    %1347 = vperm.xlu0 %1346, %v1312
    %v1348 = vpop.permute.xlu0 %1347
    %1351 = vset.pattern.permute.xlu0 0
    %1352 = vperm.xlu0 %1351, %v1313
    %v1353 = vpop.permute.xlu0 %1352
    %1356 = vset.pattern.permute.xlu0 0
    %1357 = vperm.xlu0 %1356, %v1314
    %v1358 = vpop.permute.xlu0 %1357
    %v1361 = vsel %vm288, %v1296, 0
    %v1364 = vsel %vm288, %v1297, 0
    %v1367 = vsel %vm288, %v1298, 0
    %v1370 = vsel %vm288, %v1299, 0
    %v1373 = vsel %vm288, %v1300, 0
    %v1376 = vsel %vm288, %v1301, 0
    %v1379 = vsel %vm288, %v1302, 0
    %v1382 = vsel %vm288, %v1303, 0
    %v1385 = vsel %vm288, %v1304, 0
    %v1388 = vsel %vm316, %v1294, 0
    %1390 = vmatprep.subr.mxu0 0.0
    %1391 = vmatpush1.msra.mxu0 %v1286
    %1392 = vmatprep.subr.mxu0 0.0
    %1393 = vmatpush1.msra.mxu0 %v1287
    %1394 = vmatprep.subr.mxu0 0.0
    %1395 = vmatpush1.msra.mxu0 %v1288
    %1396 = vmatprep.subr.mxu0 0.0
    %1397 = vmatpush1.msra.mxu0 %v1289
    %1398 = vmatprep.subr.mxu0 0.0
    %1399 = vmatpush1.msra.mxu0 %v1290
    %1400 = vmatprep.subr.mxu0 0.0
    %1401 = vmatpush1.msra.mxu0 %v1291
    %1402 = vmatprep.subr.mxu0 0.0
    %1403 = vmatpush1.msra.mxu0 %v1292
    %1404 = vmatprep.subr.mxu0 0.0
    %1405 = vmatpush1.msra.mxu0 %v1293
    %1406 = vmatprep.subr.mxu0 0.0
    %1407 = vmatpush1.msra.mxu0 %v1388
    %1408 = vmatprep.subr.mxu0 0.0
    %1409 = vmatpush1.msra.mxu0 0.0
    %1410 = vmatprep.subr.mxu0 0.0
    %1411 = vmatpush1.msra.mxu0 0.0
    %1412 = vmatprep.subr.mxu0 0.0
    %1413 = vmatpush1.msra.mxu0 0.0
    %1414 = vmatprep.subr.mxu0 0.0
    %1415 = vmatpush1.msra.mxu0 0.0
    %1416 = vmatprep.subr.mxu0 0.0
    %1417 = vmatpush1.msra.mxu0 0.0
    %1418 = vmatprep.subr.mxu0 0.0
    %1419 = vmatpush1.msra.mxu0 0.0
    %1420 = vmatprep.subr.mxu0 0.0
    %1421 = vmatpush1.msra.mxu0 0.0
    %1422 = vmatprep.subr.mxu0 0.0
    %1423 = vmatpush1.msra.mxu0 0.0
    %1424 = vmatprep.subr.mxu0 0.0
    %1425 = vmatpush1.msra.mxu0 0.0
    %1426 = vmatprep.subr.mxu0 0.0
    %1427 = vmatpush1.msra.mxu0 0.0
    %1428 = vmatprep.subr.mxu0 0.0
    %1429 = vmatpush1.msra.mxu0 0.0
    %1430 = vmatprep.subr.mxu0 0.0
    %1431 = vmatpush1.msra.mxu0 0.0
    %1432 = vmatprep.subr.mxu0 0.0
    %1433 = vmatpush1.msra.mxu0 0.0
    %1434 = vmatprep.subr.mxu0 0.0
    %1435 = vmatpush1.msra.mxu0 0.0
    %1436 = vmatprep.subr.mxu0 0.0
    %1437 = vmatpush1.msra.mxu0 0.0
    %1438 = vmatprep.subr.mxu0 0.0
    %1439 = vmatpush1.msra.mxu0 0.0
    %1440 = vmatprep.subr.mxu0 0.0
    %1441 = vmatpush1.msra.mxu0 0.0
    %1442 = vmatprep.subr.mxu0 0.0
    %1443 = vmatpush1.msra.mxu0 0.0
    %1444 = vmatprep.subr.mxu0 0.0
    %1445 = vmatpush1.msra.mxu0 0.0
    %1446 = vmatprep.subr.mxu0 0.0
    %1447 = vmatpush1.msra.mxu0 0.0
    %1448 = vmatprep.subr.mxu0 0.0
    %1449 = vmatpush1.msra.mxu0 0.0
    %1450 = vmatprep.subr.mxu0 0.0
    %1451 = vmatpush1.msra.mxu0 0.0
    %1452 = vmatprep.subr.mxu0 0.0
    %1453 = vmatpush1.msra.mxu0 0.0
    %1454 = vmatprep.mubr.f32.mxu0 0.0
    %1455 = vmatmul.mubr.f32.gmra.mrb[0].mxu0 %v1361
    %v1456 = vpop.f32.mrb[0].mxu0
    %v1457 = vadd.f32 %v1318, %v1456
    %v1458 = vpop.f32.mrb[0].mxu0
    %1459 = vmatprep.mubr.f32.mxu0 0.0
    %1460 = vmatmul.mubr.f32.gmra.mrb[0].mxu0 %v1364
    %v1461 = vpop.f32.mrb[0].mxu0
    %v1462 = vadd.f32 %v1323, %v1461
    %v1463 = vpop.f32.mrb[0].mxu0
    %1464 = vmatprep.mubr.f32.mxu0 0.0
    %1465 = vmatmul.mubr.f32.gmra.mrb[0].mxu0 %v1367
    %v1466 = vpop.f32.mrb[0].mxu0
    %v1467 = vadd.f32 %v1328, %v1466
    %v1468 = vpop.f32.mrb[0].mxu0
    %1469 = vmatprep.mubr.f32.mxu0 0.0
    %1470 = vmatmul.mubr.f32.gmra.mrb[0].mxu0 %v1370
    %v1471 = vpop.f32.mrb[0].mxu0
    %v1472 = vadd.f32 %v1333, %v1471
    %v1473 = vpop.f32.mrb[0].mxu0
    %1474 = vmatprep.mubr.f32.mxu0 0.0
    %1475 = vmatmul.mubr.f32.gmra.mrb[0].mxu0 %v1373
    %v1476 = vpop.f32.mrb[0].mxu0
    %v1477 = vadd.f32 %v1338, %v1476
    %v1478 = vpop.f32.mrb[0].mxu0
    %1479 = vmatprep.mubr.f32.mxu0 0.0
    %1480 = vmatmul.mubr.f32.gmra.mrb[0].mxu0 %v1376
    %v1481 = vpop.f32.mrb[0].mxu0
    %v1482 = vadd.f32 %v1343, %v1481
    %v1483 = vpop.f32.mrb[0].mxu0
    %1484 = vmatprep.mubr.f32.mxu0 0.0
    %1485 = vmatmul.mubr.f32.gmra.mrb[0].mxu0 %v1379
    %v1486 = vpop.f32.mrb[0].mxu0
    %v1487 = vadd.f32 %v1348, %v1486
    %v1488 = vpop.f32.mrb[0].mxu0
    %1489 = vmatprep.mubr.f32.mxu0 0.0
    %1490 = vmatmul.mubr.f32.gmra.mrb[0].mxu0 %v1382
    %v1491 = vpop.f32.mrb[0].mxu0
    %v1492 = vadd.f32 %v1353, %v1491
    %v1493 = vpop.f32.mrb[0].mxu0
    %1494 = vmatprep.mubr.f32.mxu0 0.0
    %1495 = vmatmul.mubr.f32.gmra.mrb[0].mxu0 %v1385
    %v1496 = vpop.f32.mrb[0].mxu0
    %v1497 = vadd.f32 %v1358, %v1496
    %v1498 = vpop.f32.mrb[0].mxu0
    %1499 = vdwg.mxu0
    %v1500 = vtanh.pop %v1457
    %v1501 = vtanh.pop %v1462
    %v1502 = vtanh.pop %v1467
    %v1503 = vtanh.pop %v1472
    %v1504 = vtanh.pop %v1477
    %v1505 = vtanh.pop %v1482
    %v1506 = vtanh.pop %v1487
    %v1507 = vtanh.pop %v1492
    %v1508 = vtanh.pop %v1497
    %s1509 = scalar_lea.vmem %s3, 432
    %v1510 = vld [vmem:[%s1509] sm:$0xff]
    %v1511 = vld [vmem:[%s1509 + $0x8] sm:$0xff]
    %v1512 = vld [vmem:[%s1509 + $0x10] sm:$0xff]
    %v1513 = vld [vmem:[%s1509 + $0x18] sm:$0xff]
    %v1514 = vld [vmem:[%s1509 + $0x20] sm:$0xff]
    %v1515 = vld [vmem:[%s1509 + $0x28] sm:$0xff]
    %v1516 = vld [vmem:[%s1509 + $0x30] sm:$0xff]
    %v1517 = vld [vmem:[%s1509 + $0x38] sm:$0xff]
    %v1518 = vld [vmem:[%s1509 + $0x40] sm:$0x3f]
    %s1519 = scalar_lea.vmem %s4, 432
    %v1520 = vld [vmem:[%s1519] sm:$0xff]
    %v1521 = vld [vmem:[%s1519 + $0x8] sm:$0xff]
    %v1522 = vld [vmem:[%s1519 + $0x10] sm:$0xff]
    %v1523 = vld [vmem:[%s1519 + $0x18] sm:$0xff]
    %v1524 = vld [vmem:[%s1519 + $0x20] sm:$0xff]
    %v1525 = vld [vmem:[%s1519 + $0x28] sm:$0xff]
    %v1526 = vld [vmem:[%s1519 + $0x30] sm:$0xff]
    %v1527 = vld [vmem:[%s1519 + $0x38] sm:$0xff]
    %v1528 = vld [vmem:[%s1519 + $0x40] sm:$0x3f]
    %1530 = vset.pattern.permute.xlu0 0
    %1531 = vperm.xlu0 %1530, %v1520
    %v1532 = vpop.permute.xlu0 %1531
    %1535 = vset.pattern.permute.xlu0 0
    %1536 = vperm.xlu0 %1535, %v1521
    %v1537 = vpop.permute.xlu0 %1536
    %1540 = vset.pattern.permute.xlu0 0
    %1541 = vperm.xlu0 %1540, %v1522
    %v1542 = vpop.permute.xlu0 %1541
    %1545 = vset.pattern.permute.xlu0 0
    %1546 = vperm.xlu0 %1545, %v1523
    %v1547 = vpop.permute.xlu0 %1546
    %1550 = vset.pattern.permute.xlu0 0
    %1551 = vperm.xlu0 %1550, %v1524
    %v1552 = vpop.permute.xlu0 %1551
    %1555 = vset.pattern.permute.xlu0 0
    %1556 = vperm.xlu0 %1555, %v1525
    %v1557 = vpop.permute.xlu0 %1556
    %1560 = vset.pattern.permute.xlu0 0
    %1561 = vperm.xlu0 %1560, %v1526
    %v1562 = vpop.permute.xlu0 %1561
    %1565 = vset.pattern.permute.xlu0 0
    %1566 = vperm.xlu0 %1565, %v1527
    %v1567 = vpop.permute.xlu0 %1566
    %1570 = vset.pattern.permute.xlu0 0
    %1571 = vperm.xlu0 %1570, %v1528
    %v1572 = vpop.permute.xlu0 %1571
    %v1575 = vsel %vm288, %v1510, 0
    %v1578 = vsel %vm288, %v1511, 0
    %v1581 = vsel %vm288, %v1512, 0
    %v1584 = vsel %vm288, %v1513, 0
    %v1587 = vsel %vm288, %v1514, 0
    %v1590 = vsel %vm288, %v1515, 0
    %v1593 = vsel %vm288, %v1516, 0
    %v1596 = vsel %vm288, %v1517, 0
    %v1599 = vsel %vm288, %v1518, 0
    %v1602 = vsel %vm316, %v1508, 0
    %1604 = vmatprep.subr.mxu0 0.0
    %1605 = vmatpush1.msra.mxu0 %v1500
    %1606 = vmatprep.subr.mxu0 0.0
    %1607 = vmatpush1.msra.mxu0 %v1501
    %1608 = vmatprep.subr.mxu0 0.0
    %1609 = vmatpush1.msra.mxu0 %v1502
    %1610 = vmatprep.subr.mxu0 0.0
    %1611 = vmatpush1.msra.mxu0 %v1503
    %1612 = vmatprep.subr.mxu0 0.0
    %1613 = vmatpush1.msra.mxu0 %v1504
    %1614 = vmatprep.subr.mxu0 0.0
    %1615 = vmatpush1.msra.mxu0 %v1505
    %1616 = vmatprep.subr.mxu0 0.0
    %1617 = vmatpush1.msra.mxu0 %v1506
    %1618 = vmatprep.subr.mxu0 0.0
    %1619 = vmatpush1.msra.mxu0 %v1507
    %1620 = vmatprep.subr.mxu0 0.0
    %1621 = vmatpush1.msra.mxu0 %v1602
    %1622 = vmatprep.subr.mxu0 0.0
    %1623 = vmatpush1.msra.mxu0 0.0
    %1624 = vmatprep.subr.mxu0 0.0
    %1625 = vmatpush1.msra.mxu0 0.0
    %1626 = vmatprep.subr.mxu0 0.0
    %1627 = vmatpush1.msra.mxu0 0.0
    %1628 = vmatprep.subr.mxu0 0.0
    %1629 = vmatpush1.msra.mxu0 0.0
    %1630 = vmatprep.subr.mxu0 0.0
    %1631 = vmatpush1.msra.mxu0 0.0
    %1632 = vmatprep.subr.mxu0 0.0
    %1633 = vmatpush1.msra.mxu0 0.0
    %1634 = vmatprep.subr.mxu0 0.0
    %1635 = vmatpush1.msra.mxu0 0.0
    %1636 = vmatprep.subr.mxu0 0.0
    %1637 = vmatpush1.msra.mxu0 0.0
    %1638 = vmatprep.subr.mxu0 0.0
    %1639 = vmatpush1.msra.mxu0 0.0
    %1640 = vmatprep.subr.mxu0 0.0
    %1641 = vmatpush1.msra.mxu0 0.0
    %1642 = vmatprep.subr.mxu0 0.0
    %1643 = vmatpush1.msra.mxu0 0.0
    %1644 = vmatprep.subr.mxu0 0.0
    %1645 = vmatpush1.msra.mxu0 0.0
    %1646 = vmatprep.subr.mxu0 0.0
    %1647 = vmatpush1.msra.mxu0 0.0
    %1648 = vmatprep.subr.mxu0 0.0
    %1649 = vmatpush1.msra.mxu0 0.0
    %1650 = vmatprep.subr.mxu0 0.0
    %1651 = vmatpush1.msra.mxu0 0.0
    %1652 = vmatprep.subr.mxu0 0.0
    %1653 = vmatpush1.msra.mxu0 0.0
    %1654 = vmatprep.subr.mxu0 0.0
    %1655 = vmatpush1.msra.mxu0 0.0
    %1656 = vmatprep.subr.mxu0 0.0
    %1657 = vmatpush1.msra.mxu0 0.0
    %1658 = vmatprep.subr.mxu0 0.0
    %1659 = vmatpush1.msra.mxu0 0.0
    %1660 = vmatprep.subr.mxu0 0.0
    %1661 = vmatpush1.msra.mxu0 0.0
    %1662 = vmatprep.subr.mxu0 0.0
    %1663 = vmatpush1.msra.mxu0 0.0
    %1664 = vmatprep.subr.mxu0 0.0
    %1665 = vmatpush1.msra.mxu0 0.0
    %1666 = vmatprep.subr.mxu0 0.0
    %1667 = vmatpush1.msra.mxu0 0.0
    %1668 = vmatprep.mubr.f32.mxu0 0.0
    %1669 = vmatmul.mubr.f32.gmra.mrb[0].mxu0 %v1575
    %v1670 = vpop.f32.mrb[0].mxu0
    %v1671 = vadd.f32 %v1532, %v1670
    %v1672 = vpop.f32.mrb[0].mxu0
    %1673 = vmatprep.mubr.f32.mxu0 0.0
    %1674 = vmatmul.mubr.f32.gmra.mrb[0].mxu0 %v1578
    %v1675 = vpop.f32.mrb[0].mxu0
    %v1676 = vadd.f32 %v1537, %v1675
    %v1677 = vpop.f32.mrb[0].mxu0
    %1678 = vmatprep.mubr.f32.mxu0 0.0
    %1679 = vmatmul.mubr.f32.gmra.mrb[0].mxu0 %v1581
    %v1680 = vpop.f32.mrb[0].mxu0
    %v1681 = vadd.f32 %v1542, %v1680
    %v1682 = vpop.f32.mrb[0].mxu0
    %1683 = vmatprep.mubr.f32.mxu0 0.0
    %1684 = vmatmul.mubr.f32.gmra.mrb[0].mxu0 %v1584
    %v1685 = vpop.f32.mrb[0].mxu0
    %v1686 = vadd.f32 %v1547, %v1685
    %v1687 = vpop.f32.mrb[0].mxu0
    %1688 = vmatprep.mubr.f32.mxu0 0.0
    %1689 = vmatmul.mubr.f32.gmra.mrb[0].mxu0 %v1587
    %v1690 = vpop.f32.mrb[0].mxu0
    %v1691 = vadd.f32 %v1552, %v1690
    %v1692 = vpop.f32.mrb[0].mxu0
    %1693 = vmatprep.mubr.f32.mxu0 0.0
    %1694 = vmatmul.mubr.f32.gmra.mrb[0].mxu0 %v1590
    %v1695 = vpop.f32.mrb[0].mxu0
    %v1696 = vadd.f32 %v1557, %v1695
    %v1697 = vpop.f32.mrb[0].mxu0
    %1698 = vmatprep.mubr.f32.mxu0 0.0
    %1699 = vmatmul.mubr.f32.gmra.mrb[0].mxu0 %v1593
    %v1700 = vpop.f32.mrb[0].mxu0
    %v1701 = vadd.f32 %v1562, %v1700
    %v1702 = vpop.f32.mrb[0].mxu0
    %1703 = vmatprep.mubr.f32.mxu0 0.0
    %1704 = vmatmul.mubr.f32.gmra.mrb[0].mxu0 %v1596
    %v1705 = vpop.f32.mrb[0].mxu0
    %v1706 = vadd.f32 %v1567, %v1705
    %v1707 = vpop.f32.mrb[0].mxu0
    %1708 = vmatprep.mubr.f32.mxu0 0.0
    %1709 = vmatmul.mubr.f32.gmra.mrb[0].mxu0 %v1599
    %v1710 = vpop.f32.mrb[0].mxu0
    %v1711 = vadd.f32 %v1572, %v1710
    %v1712 = vpop.f32.mrb[0].mxu0
    %1713 = vdwg.mxu0
    %v1714 = vtanh.pop %v1671
    %v1715 = vtanh.pop %v1676
    %v1716 = vtanh.pop %v1681
    %v1717 = vtanh.pop %v1686
    %v1718 = vtanh.pop %v1691
    %v1719 = vtanh.pop %v1696
    %v1720 = vtanh.pop %v1701
    %v1721 = vtanh.pop %v1706
    %v1722 = vtanh.pop %v1711
    %v1723 = vld [vmem:[%s5] sm:$0xff]
    %v1724 = vld [vmem:[%s6] sm:$0xff]
    %1726 = vset.pattern.permute.xlu0 0
    %1727 = vperm.xlu0 %1726, %v1724
    %v1728 = vpop.permute.xlu0 %1727
    %v1731 = vsel %vm288, %v1723, 0
    %v1734 = vsel %vm316, %v1722, 0
    %1736 = vmatprep.subr.mxu0 0.0
    %1737 = vmatpush1.msra.mxu0 %v1714
    %1738 = vmatprep.subr.mxu0 0.0
    %1739 = vmatpush1.msra.mxu0 %v1715
    %1740 = vmatprep.subr.mxu0 0.0
    %1741 = vmatpush1.msra.mxu0 %v1716
    %1742 = vmatprep.subr.mxu0 0.0
    %1743 = vmatpush1.msra.mxu0 %v1717
    %1744 = vmatprep.subr.mxu0 0.0
    %1745 = vmatpush1.msra.mxu0 %v1718
    %1746 = vmatprep.subr.mxu0 0.0
    %1747 = vmatpush1.msra.mxu0 %v1719
    %1748 = vmatprep.subr.mxu0 0.0
    %1749 = vmatpush1.msra.mxu0 %v1720
    %1750 = vmatprep.subr.mxu0 0.0
    %1751 = vmatpush1.msra.mxu0 %v1721
    %1752 = vmatprep.subr.mxu0 0.0
    %1753 = vmatpush1.msra.mxu0 %v1734
    %1754 = vmatprep.subr.mxu0 0.0
    %1755 = vmatpush1.msra.mxu0 0.0
    %1756 = vmatprep.subr.mxu0 0.0
    %1757 = vmatpush1.msra.mxu0 0.0
    %1758 = vmatprep.subr.mxu0 0.0
    %1759 = vmatpush1.msra.mxu0 0.0
    %1760 = vmatprep.subr.mxu0 0.0
    %1761 = vmatpush1.msra.mxu0 0.0
    %1762 = vmatprep.subr.mxu0 0.0
    %1763 = vmatpush1.msra.mxu0 0.0
    %1764 = vmatprep.subr.mxu0 0.0
    %1765 = vmatpush1.msra.mxu0 0.0
    %1766 = vmatprep.subr.mxu0 0.0
    %1767 = vmatpush1.msra.mxu0 0.0
    %1768 = vmatprep.subr.mxu0 0.0
    %1769 = vmatpush1.msra.mxu0 0.0
    %1770 = vmatprep.subr.mxu0 0.0
    %1771 = vmatpush1.msra.mxu0 0.0
    %1772 = vmatprep.subr.mxu0 0.0
    %1773 = vmatpush1.msra.mxu0 0.0
    %1774 = vmatprep.subr.mxu0 0.0
    %1775 = vmatpush1.msra.mxu0 0.0
    %1776 = vmatprep.subr.mxu0 0.0
    %1777 = vmatpush1.msra.mxu0 0.0
    %1778 = vmatprep.subr.mxu0 0.0
    %1779 = vmatpush1.msra.mxu0 0.0
    %1780 = vmatprep.subr.mxu0 0.0
    %1781 = vmatpush1.msra.mxu0 0.0
    %1782 = vmatprep.subr.mxu0 0.0
    %1783 = vmatpush1.msra.mxu0 0.0
    %1784 = vmatprep.subr.mxu0 0.0
    %1785 = vmatpush1.msra.mxu0 0.0
    %1786 = vmatprep.subr.mxu0 0.0
    %1787 = vmatpush1.msra.mxu0 0.0
    %1788 = vmatprep.subr.mxu0 0.0
    %1789 = vmatpush1.msra.mxu0 0.0
    %1790 = vmatprep.subr.mxu0 0.0
    %1791 = vmatpush1.msra.mxu0 0.0
    %1792 = vmatprep.subr.mxu0 0.0
    %1793 = vmatpush1.msra.mxu0 0.0
    %1794 = vmatprep.subr.mxu0 0.0
    %1795 = vmatpush1.msra.mxu0 0.0
    %1796 = vmatprep.subr.mxu0 0.0
    %1797 = vmatpush1.msra.mxu0 0.0
    %1798 = vmatprep.subr.mxu0 0.0
    %1799 = vmatpush1.msra.mxu0 0.0
    %1800 = vmatprep.mubr.f32.mxu0 0.0
    %1801 = vmatmul.mubr.f32.gmra.mrb[0].mxu0 %v1731
    %v1802 = vpop.f32.mrb[0].mxu0
    %v1803 = vadd.f32 %v1728, %v1802
    %v1804 = vpop.f32.mrb[0].mxu0
    %1805 = vdwg.mxu0
    %1806 = vst [vmem:[#allocation2] sm:$0xff] %v1803
    // Predicated region
    $region30: #{tpu_custom_call.1} parent=1 // pred_check
      _
    $region31: #{tpu_custom_call.1} parent=1 // pred_check_branch
      %1808 = sbr.rel (0) target = $region33
    $region32: #{tpu_custom_call.1} parent=1 // pred_region
      %s1810 = ssub.s32 128, 128
      %1811 = vsyncadd [#allocation3], %s1810
      %s1813 = sshll.u32 [#allocation2], 4
      %s1814 = int_to_ptr.vmem [resolvable:$true] %s1813
      %1816 = dma.vmem_to_hbm [thread:$0]  %s1814, 128, %s7, [#allocation3]
    $region33: #{tpu_custom_call.1} parent=1 // pred_fallthru
      _
    // Predicated region
    $region34: #{tpu_custom_call.1} parent=1 // pred_check
      _
    $region35: #{tpu_custom_call.1} parent=1 // pred_check_branch
      %1818 = sbr.rel (0) target = $region37
    $region36: #{tpu_custom_call.1} parent=1 // pred_region
      %1819 = dma.done [#allocation3], 128
    $region37: #{tpu_custom_call.1} parent=1 // pred_fallthru
      _
    %1820 = vsyncpa [#allocation3], 1

</llo_original>
